<compile_context>
chip_gen: v7x
topology: tpu7x:2x2x1
jax: 0.10.0
libtpu: 0.0.40
codegen_flags: <defaults>
</compile_context>

<pallas_src>
import functools
import math

import jax
import jax.numpy as jnp
from jax.experimental import pallas as pl
from jax.experimental.pallas import tpu as pltpu

EPS = 1e-5
FILTER_LIST = [64, 64, 128, 256, 512]
ACT_DTYPE = jnp.bfloat16


def get_layers(num_layers):
    if num_layers == 50:
        return [3, 4, 14, 3]
    elif num_layers == 100:
        return [3, 13, 30, 3]
    elif num_layers == 152:
        return [3, 8, 36, 3]


def _round_up(x, m):
    return (x + m - 1) // m * m


# ------------------------------ tile selection ------------------------------

def _tile_m(M):
    """(tm, Mp): single block for small M; 512/256 tiles when pad waste <= 10%."""
    if M <= 256:
        Mp = _round_up(M, 8)
        return Mp, Mp
    for tm in (512, 256):
        Mp = _round_up(M, tm)
        if (Mp - M) * 10 <= M:
            return tm, Mp
    return 128, _round_up(M, 128)


def _tile_n(Np):
    if Np <= 256:
        return Np
    if Np % 256 == 0:
        return 256
    return 128


def _tile_k(Kp):
    if Kp <= 4608:            # one K block: A/B tiles stay <= ~2.5 MiB in bf16
        return Kp
    for tk in (2048, 1024, 512, 256, 128):
        if Kp % tk == 0:
            return tk
    return 128


# ------------------------------ Pallas kernels ------------------------------
# epi rows: 0 = scale, 1 = shift (BN shift + bias*scale), 2 = PReLU slope.

def _mm_epi_kernel(a_ref, b_ref, e_ref, o_ref, acc_ref):
    k = pl.program_id(2)

    @pl.when(k == 0)
    def _():
        acc_ref[...] = jnp.zeros_like(acc_ref)

    acc_ref[...] += jnp.dot(a_ref[...], b_ref[...],
                            preferred_element_type=jnp.float32)

    @pl.when(k == pl.num_programs(2) - 1)
    def _():
        y = acc_ref[...] * e_ref[0:1, :] + e_ref[1:2, :]
        y = jnp.where(y >= 0.0, y, y * e_ref[2:3, :])
        o_ref[...] = y.astype(o_ref.dtype)


def _mm_epi_res_kernel(a_ref, b_ref, e_ref, r_ref, o_ref, acc_ref):
    k = pl.program_id(2)

    @pl.when(k == 0)
    def _():
        acc_ref[...] = jnp.zeros_like(acc_ref)

    acc_ref[...] += jnp.dot(a_ref[...], b_ref[...],
                            preferred_element_type=jnp.float32)

    @pl.when(k == pl.num_programs(2) - 1)
    def _():
        y = acc_ref[...] * e_ref[0:1, :] + e_ref[1:2, :]
        y = jnp.where(y >= 0.0, y, y * e_ref[2:3, :])
        y = y + r_ref[...].astype(jnp.float32)
        o_ref[...] = y.astype(o_ref.dtype)


def matmul_fused(a, b_padded, scale, shift, slope, residual=None,
                 out_dtype=ACT_DTYPE):
    """out = prelu((A @ B) * scale + shift, slope) [+ residual].

    a:        (M, K) float, cast to bf16 here.
    b_padded: (Kp, Np) bf16, zero-padded once at init time.
    scale/shift/slope: (N,) f32 per-output-channel epilogue params (N <= Np).
    residual: optional (M, N).
    returns:  (M, N) in out_dtype.
    """
    M, K = a.shape
    Kp, Np = b_padded.shape
    N = scale.shape[0]
    tm, Mp = _tile_m(M)
    tn = _tile_n(Np)
    tk = _tile_k(Kp)

    a_p = jnp.pad(a.astype(ACT_DTYPE), ((0, Mp - M), (0, Kp - K)))
    epi = jnp.zeros((8, Np), jnp.float32)
    epi = epi.at[0, :N].set(scale.astype(jnp.float32))
    epi = epi.at[1, :N].set(shift.astype(jnp.float32))
    epi = epi.at[2, :N].set(slope.astype(jnp.float32))

    grid = (Mp // tm, Np // tn, Kp // tk)
    a_spec = pl.BlockSpec((tm, tk), lambda i, j, k: (i, k))
    b_spec = pl.BlockSpec((tk, tn), lambda i, j, k: (k, j))
    e_spec = pl.BlockSpec((8, tn), lambda i, j, k: (0, j))
    o_spec = pl.BlockSpec((tm, tn), lambda i, j, k: (i, j))
    cparams = pltpu.CompilerParams(
        dimension_semantics=("parallel", "parallel", "arbitrary"))
    scratch = [pltpu.VMEM((tm, tn), jnp.float32)]
    out_shape = jax.ShapeDtypeStruct((Mp, Np), out_dtype)

    if residual is None:
        out = pl.pallas_call(
            _mm_epi_kernel,
            out_shape=out_shape,
            grid_spec=pltpu.PrefetchScalarGridSpec(
                num_scalar_prefetch=0, grid=grid,
                in_specs=[a_spec, b_spec, e_spec],
                out_specs=o_spec, scratch_shapes=scratch),
            compiler_params=cparams,
        )(a_p, b_padded, epi)
    else:
        r_p = jnp.pad(residual.astype(ACT_DTYPE), ((0, Mp - M), (0, Np - N)))
        r_spec = pl.BlockSpec((tm, tn), lambda i, j, k: (i, j))
        out = pl.pallas_call(
            _mm_epi_res_kernel,
            out_shape=out_shape,
            grid_spec=pltpu.PrefetchScalarGridSpec(
                num_scalar_prefetch=0, grid=grid,
                in_specs=[a_spec, b_spec, e_spec, r_spec],
                out_specs=o_spec, scratch_shapes=scratch),
            compiler_params=cparams,
        )(a_p, b_padded, epi, r_p)
    return out[:M, :N]


# --------------------------- conv via im2col glue ---------------------------
# The im2col gather is XLA glue traced inside per-block jax.jit functions, so it
# fuses with the preceding BN affine / padding and is written once in bf16.

def im2col(x, ksize, stride, pad):
    n, h, w, c = x.shape
    if pad:
        x = jnp.pad(x, ((0, 0), (pad, pad), (pad, pad), (0, 0)))
    ho = (h + 2 * pad - ksize) // stride + 1
    wo = (w + 2 * pad - ksize) // stride + 1
    cols = []
    for dy in range(ksize):
        for dx in range(ksize):
            cols.append(x[:, dy:dy + (ho - 1) * stride + 1:stride,
                           dx:dx + (wo - 1) * stride + 1:stride, :])
    patches = jnp.concatenate(cols, axis=-1)       # (N, Ho, Wo, k*k*C)
    return patches.reshape(n * ho * wo, ksize * ksize * c), (n, ho, wo)


def bn_scale_shift(bn):
    s = bn["gamma"] / jnp.sqrt(bn["var"] + EPS)
    t = bn["beta"] - bn["mean"] * s
    return s, t


def epi_params(cout, bias=None, bn=None, prelu=None):
    if bn is not None:
        s, t = bn_scale_shift(bn)
    else:
        s = jnp.ones((cout,), jnp.float32)
        t = jnp.zeros((cout,), jnp.float32)
    if bias is not None:
        t = t + bias.astype(jnp.float32) * s       # (acc+bias)*s + t = acc*s + (t+bias*s)
    slope = prelu if prelu is not None else jnp.ones((cout,), jnp.float32)
    return s, t, slope


def conv2d(x, w_padded, cout, ksize, stride, pad, scale, shift, slope,
           residual=None, out_dtype=ACT_DTYPE):
    a, (n, ho, wo) = im2col(x, ksize, stride, pad)
    res2d = residual.reshape(n * ho * wo, cout) if residual is not None else None
    out = matmul_fused(a, w_padded, scale, shift, slope, residual=res2d,
                       out_dtype=out_dtype)
    return out.reshape(n, ho, wo, cout)


# ------------------------------- parameters --------------------------------

def xavier_uniform(key, shape, fan_in, fan_out):
    a = math.sqrt(6.0 / (fan_in + fan_out))
    return jax.random.uniform(key, shape, jnp.float32, -a, a)


def pad_weight(w_flat):
    """Zero-pad (K, N) -> (Kp, Np) multiples of 128 and cast to bf16 (once)."""
    K, N = w_flat.shape
    Kp, Np = _round_up(K, 128), _round_up(N, 128)
    return jnp.zeros((Kp, Np), ACT_DTYPE).at[:K, :N].set(w_flat.astype(ACT_DTYPE))


def init_conv(key, cin, cout, k):
    # torch layout (cout, cin, k, k) -> flattened (k*k*cin, cout) matching im2col.
    w = xavier_uniform(key, (cout, cin, k, k), cin * k * k, cout * k * k)
    w_flat = jnp.transpose(w, (2, 3, 1, 0)).reshape(k * k * cin, cout)
    return pad_weight(w_flat)


def init_bn(c):
    return {"gamma": jnp.ones((c,), jnp.float32),
            "beta": jnp.zeros((c,), jnp.float32),
            "mean": jnp.zeros((c,), jnp.float32),
            "var": jnp.ones((c,), jnp.float32)}


def init_resnet_params(key, num_layers=50, feature_dim=512,
                       filter_list=FILTER_LIST):
    layers = get_layers(num_layers)
    keys = iter(jax.random.split(key, 4 * sum(layers) + 16))
    params = {}
    params["input"] = {
        "w": init_conv(next(keys), 3, filter_list[0], 3),
        "bn": init_bn(filter_list[0]),
        "prelu": jnp.full((filter_list[0],), 0.25, jnp.float32),
    }

    def make_block(cin, cout, stride, dim_match):
        p = {
            "bn0": init_bn(cin),
            "w1": init_conv(next(keys), cin, cout, 3),
            "bn1": init_bn(cout),
            "prelu": jnp.full((cout,), 0.25, jnp.float32),
            "w2": init_conv(next(keys), cout, cout, 3),
            "bn2": init_bn(cout),
            "stride": stride,
        }
        if dim_match:
            p["shortcut"] = None
        else:
            p["shortcut"] = {"w": init_conv(next(keys), cin, cout, 1),
                             "bn": init_bn(cout)}
        return p

    def make_layer(cin, cout, blocks, stride):
        blks = [make_block(cin, cout, stride, False)]
        for _ in range(1, blocks):
            blks.append(make_block(cout, cout, 1, True))
        return blks

    params["layer1"] = make_layer(filter_list[0], filter_list[1], layers[0], 2)
    params["layer2"] = make_layer(filter_list[1], filter_list[2], layers[1], 2)
    params["layer3"] = make_layer(filter_list[2], filter_list[3], layers[2], 2)
    params["layer4"] = make_layer(filter_list[3], filter_list[4], layers[3], 2)

    params["conv_bridge"] = {
        "w": init_conv(next(keys), 512, 3072, 3),
        "b": jnp.zeros((3072,), jnp.float32),
    }
    lw = xavier_uniform(next(keys), (feature_dim, 512 * 7 * 7),
                        512 * 7 * 7, feature_dim)
    params["output"] = {
        "bn2d": init_bn(512),
        "linear_wT": pad_weight(jnp.transpose(lw)),     # (25088, feature_dim)
        "linear_b": jnp.zeros((feature_dim,), jnp.float32),
        "bn1d": init_bn(feature_dim),
    }
    return params


# --------------------------- jitted forward pieces ---------------------------

@jax.jit
def _input_fwd(p, x_nchw):
    x = jnp.transpose(x_nchw, (0, 2, 3, 1)).astype(ACT_DTYPE)   # NCHW -> NHWC
    cout = p["prelu"].shape[0]
    s, t, sl = epi_params(cout, bn=p["bn"], prelu=p["prelu"])
    return conv2d(x, p["w"], cout, 3, 1, 1, s, t, sl)


@functools.partial(jax.jit, static_argnames=("stride",))
def _block_fwd(p, x, *, stride):
    cout = p["prelu"].shape[0]
    # pre-conv BatchNorm: plain affine fused by XLA into the im2col gather below.
    s0, t0 = bn_scale_shift(p["bn0"])
    pre = (x.astype(jnp.float32) * s0 + t0).astype(ACT_DTYPE)
    # conv1 (3x3, s=1) + BN1 + PReLU fused into the matmul epilogue.
    s1, t1, sl1 = epi_params(cout, bn=p["bn1"], prelu=p["prelu"])
    h1 = conv2d(pre, p["w1"], cout, 3, 1, 1, s1, t1, sl1)
    if p["shortcut"] is None:
        identity = x                     # dim_match blocks always have stride 1
    else:
        ss, st, ssl = epi_params(cout, bn=p["shortcut"]["bn"])
        identity = conv2d(x, p["shortcut"]["w"], cout, 1, stride, 0, ss, st, ssl)
    # conv2 (3x3, stride) + BN2 + residual add fused into the matmul epilogue.
    s2, t2, sl2 = epi_params(cout, bn=p["bn2"])
    return conv2d(h1, p["w2"], cout, 3, stride, 1, s2, t2, sl2, residual=identity)


@jax.jit
def _head_fwd(p, x):
    n, h, w, c = x.shape
    s, t = bn_scale_shift(p["bn2d"])
    xb = x.astype(jnp.float32) * s + t              # BN2d (affine, fuses with flatten)
    # Dropout: inference-mode identity.
    flat = jnp.transpose(xb, (0, 3, 1, 2)).reshape(n, -1)   # torch .view(N,-1) order
    s1, t1, sl1 = epi_params(p["linear_b"].shape[0], bias=p["linear_b"],
                             bn=p["bn1d"])
    return matmul_fused(flat, p["linear_wT"], s1, t1, sl1, out_dtype=jnp.float32)


@jax.jit
def _bridge_fwd(p, x):
    cout = p["b"].shape[0]
    s, t, sl = epi_params(cout, bias=p["b"])
    y = conv2d(x, p["w"], cout, 3, 1, 1, s, t, sl, out_dtype=jnp.float32)
    return jnp.transpose(y, (0, 3, 1, 2))           # NHWC -> NCHW


def resnet_forward(params, x_nchw, train=True):
    x = _input_fwd(params["input"], x_nchw)
    for layer in ("layer1", "layer2", "layer3", "layer4"):
        for blk in params[layer]:
            stride = blk["stride"]
            p = {k: v for k, v in blk.items() if k != "stride"}
            x = _block_fwd(p, x, stride=stride)
    out = _head_fwd(params["output"], x)
    if train:
        x_recon = _bridge_fwd(params["conv_bridge"], x)
        return out, x_recon
    return out


if __name__ == "__main__":
    key = jax.random.PRNGKey(0)
    pkey, xkey = jax.random.split(key)
    params = init_resnet_params(pkey, num_layers=50, feature_dim=512)
    # The module's Linear(512*7*7) after four stride-2 stages implies 112x112 input.
    x = jax.random.normal(xkey, (1, 3, 112, 112), jnp.float32)
    out, x_recon = resnet_forward(params, x, train=True)
    out = jax.block_until_ready(out)
    x_recon = jax.block_until_ready(x_recon)
    assert out.shape == (1, 512)
    assert x_recon.shape == (1, 3072, 7, 7)
    assert bool(jnp.all(jnp.isfinite(out))) and bool(jnp.all(jnp.isfinite(x_recon)))
    print("KERNEL_OK")
</pallas_src>

<mosaic_0001>
module attributes {stable_mosaic.version = 11 : i64} {
  func.func @_mm_epi_kernel(%arg0: i32, %arg1: i32, %arg2: i32, %arg3: memref<512x128xbf16, #tpu.memory_space<vmem>>, %arg4: memref<128x128xbf16, #tpu.memory_space<vmem>>, %arg5: memref<8x128xf32, #tpu.memory_space<vmem>>, %arg6: memref<512x128xbf16, #tpu.memory_space<vmem>>, %arg7: memref<512x128xf32, #tpu.memory_space<vmem>>) attributes {dimension_semantics = [#tpu.dimension_semantics<parallel>, #tpu.dimension_semantics<parallel>, #tpu.dimension_semantics<arbitrary>], iteration_bounds = array<i64: 25, 1, 1>, scalar_prefetch = 0 : i64, scratch_operands = 1 : i64, tpu.core_type = #tpu.core_type<tc>, window_params = [{transform_indices = @transform_0, window_bounds = array<i64: 512, 128>}, {transform_indices = @transform_1, window_bounds = array<i64: 128, 128>}, {transform_indices = @transform_2, window_bounds = array<i64: 8, 128>}, {transform_indices = @transform_3, window_bounds = array<i64: 512, 128>}]} {
    %c0_i32 = arith.constant 0 : i32
    %0 = arith.cmpi eq, %arg2, %c0_i32 : i32
    %1 = arith.extui %0 : i1 to i32
    %c0_i32_0 = arith.constant 0 : i32
    %2 = arith.cmpi ne, %1, %c0_i32_0 : i32
    scf.if %2 {
      %cst_10 = arith.constant 0.000000e+00 : f32
      %12 = vector.broadcast %cst_10 : f32 to vector<512x128xf32>
      %c0_11 = arith.constant 0 : index
      %c0_12 = arith.constant 0 : index
      %13 = vector.load %arg7[%c0_11, %c0_12] : memref<512x128xf32, #tpu.memory_space<vmem>>, vector<512x128xf32>
      tpu.vector_store %arg7[%c0_11, %c0_12], %12 {strides = array<i32>} : memref<512x128xf32, #tpu.memory_space<vmem>>, vector<512x128xf32>,
    } else {
    }
    %c0 = arith.constant 0 : index
    %c0_1 = arith.constant 0 : index
    %3 = vector.load %arg7[%c0, %c0_1] : memref<512x128xf32, #tpu.memory_space<vmem>>, vector<512x128xf32>
    %c0_2 = arith.constant 0 : index
    %c0_3 = arith.constant 0 : index
    %4 = vector.load %arg3[%c0_2, %c0_3] : memref<512x128xbf16, #tpu.memory_space<vmem>>, vector<512x128xbf16>
    %c0_4 = arith.constant 0 : index
    %c0_5 = arith.constant 0 : index
    %5 = vector.load %arg4[%c0_4, %c0_5] : memref<128x128xbf16, #tpu.memory_space<vmem>>, vector<128x128xbf16>
    %cst = arith.constant dense<0.000000e+00> : vector<512x128xf32>
    %6 = tpu.matmul %4, %5, %cst {dimension_numbers = #tpu.dot_dimension_numbers<[1], [0], [0], [1], [0, 0, 1, 1], [], []>} : vector<512x128xbf16>, vector<128x128xbf16>, vector<512x128xf32> -> vector<512x128xf32>
    %7 = arith.addf %3, %6 : vector<512x128xf32>
    %c0_6 = arith.constant 0 : index
    %c0_7 = arith.constant 0 : index
    %8 = vector.load %arg7[%c0_6, %c0_7] : memref<512x128xf32, #tpu.memory_space<vmem>>, vector<512x128xf32>
    tpu.vector_store %arg7[%c0_6, %c0_7], %7 {strides = array<i32>} : memref<512x128xf32, #tpu.memory_space<vmem>>, vector<512x128xf32>,
    %c0_i32_8 = arith.constant 0 : i32
    %9 = arith.cmpi eq, %arg2, %c0_i32_8 : i32
    %10 = arith.extui %9 : i1 to i32
    %c0_i32_9 = arith.constant 0 : i32
    %11 = arith.cmpi ne, %10, %c0_i32_9 : i32
    scf.if %11 {
      %c0_10 = arith.constant 0 : index
      %c0_11 = arith.constant 0 : index
      %12 = vector.load %arg7[%c0_10, %c0_11] : memref<512x128xf32, #tpu.memory_space<vmem>>, vector<512x128xf32>
      %c0_12 = arith.constant 0 : index
      %c0_13 = arith.constant 0 : index
      %13 = vector.load %arg5[%c0_12, %c0_13] : memref<8x128xf32, #tpu.memory_space<vmem>>, vector<1x128xf32>
      %14 = vector.broadcast %13 : vector<1x128xf32> to vector<512x128xf32>
      %15 = arith.mulf %12, %14 : vector<512x128xf32>
      %c1 = arith.constant 1 : index
      %c0_14 = arith.constant 0 : index
      %16 = vector.load %arg5[%c1, %c0_14] : memref<8x128xf32, #tpu.memory_space<vmem>>, vector<1x128xf32>
      %17 = vector.broadcast %16 : vector<1x128xf32> to vector<512x128xf32>
      %18 = arith.addf %15, %17 : vector<512x128xf32>
      %cst_15 = arith.constant 0.000000e+00 : f32
      %19 = vector.broadcast %cst_15 : f32 to vector<512x128xf32>
      %20 = arith.cmpf oge, %18, %19 : vector<512x128xf32>
      %c2 = arith.constant 2 : index
      %c0_16 = arith.constant 0 : index
      %21 = vector.load %arg5[%c2, %c0_16] : memref<8x128xf32, #tpu.memory_space<vmem>>, vector<1x128xf32>
      %22 = vector.broadcast %21 : vector<1x128xf32> to vector<512x128xf32>
      %23 = arith.mulf %18, %22 : vector<512x128xf32>
      %24 = arith.select %20, %18, %23 : vector<512x128xi1>, vector<512x128xf32>
      %25 = arith.truncf %24 : vector<512x128xf32> to vector<512x128xbf16>
      %c0_17 = arith.constant 0 : index
      %c0_18 = arith.constant 0 : index
      %26 = vector.load %arg6[%c0_17, %c0_18] : memref<512x128xbf16, #tpu.memory_space<vmem>>, vector<512x128xbf16>
      tpu.vector_store %arg6[%c0_17, %c0_18], %25 {strides = array<i32>} : memref<512x128xbf16, #tpu.memory_space<vmem>>, vector<512x128xbf16>,
    } else {
    }
    return
  }
  func.func @transform_0(%arg0: i32, %arg1: i32, %arg2: i32) -> (i32, i32) {
    %c0_i32 = arith.constant 0 : i32
    return %arg0, %arg2 : i32, i32
  }
  func.func @transform_1(%arg0: i32, %arg1: i32, %arg2: i32) -> (i32, i32) {
    %c0_i32 = arith.constant 0 : i32
    return %arg2, %arg1 : i32, i32
  }
  func.func @transform_2(%arg0: i32, %arg1: i32, %arg2: i32) -> (i32, i32) {
    %c0_i32 = arith.constant 0 : i32
    %c0_i32_0 = arith.constant 0 : i32
    return %c0_i32, %arg1 : i32, i32
  }
  func.func @transform_3(%arg0: i32, %arg1: i32, %arg2: i32) -> (i32, i32) {
    %c0_i32 = arith.constant 0 : i32
    return %arg0, %arg1 : i32, i32
  }
}

</mosaic_0001>

<llo_original>
// kernel: _input_fwd.1
$region0: #{_input_fwd.1}
  #allocation0 [shape = 'u32[]', space=smem, size = 0x4, offset = 0x4, fixed_abs, tag = 'smem constant byte address 0x4 - core index']
  #allocation1 [shape = 'u32[144,128]{1,0:T(1,128)}', space=vmem, size = 0x12000, scoped, tag = 'internal scratch']
  #allocation2 [shape = 'f32[512,128]{1,0:T(8,128)}', space=vmem, size = 0x40000, scoped, tag = 'scratch operand']
  %s0 = inlined_call_operand.vmem [shape: bf16[12800,128], index: 0, kind: input, shape index: {}]
  %s1 = inlined_call_operand.vmem [shape: bf16[128,128], index: 1, kind: input, shape index: {}]
  %s2 = inlined_call_operand.vmem [shape: f32[8,128], index: 2, kind: input, shape index: {}]
  %s3 = inlined_call_operand.vmem [shape: bf16[12800,128], index: 3, kind: output, shape index: {}]
  %s4 = sld [smem:[#allocation0]]
  $region53: #{_input_fwd.1} parent=0
    _
  %s6 = ssub.s32 1, %s4
  %s7 = scalar_select 0, %s6, %s4
  loop: start=0, step=1, limit=27
  $region2: #{_input_fwd.1} parent=0 // loop_pre_header
    _
  $region3: #{_input_fwd.1} parent=0 // loop_header
    %s9 = sphi 0, %s13
    %p10 = scmp.ge.s32.totalorder %s9, 27
    %s16 = sphi 0, %s35
    %s17 = sphi 0, %s31
    %s18 = sphi 0, %s27
    %s19 = sphi 0, %s16
    %s20 = sphi 0, %s17
    %s21 = sphi 0, %s18
    %s22 = sphi 0, %s19
    %s23 = sphi 0, %s20
    %s24 = sphi 0, %s21
    %s40 = sphi 0, %s42
    %s43 = sphi 0, %s40
    %s44 = sphi 0, %s43
    %s60 = sphi 0, %s44
    %s68 = sphi 0, %s70
    %s71 = sphi 0, %s68
    %s72 = sphi 0, %s71
    %s88 = sphi 0, %s72
    %s94 = sphi 0, %s96
    %s97 = sphi 0, %s94
    %s98 = sphi 0, %s97
    %s114 = sphi 0, %s98
    %s122 = sphi 0, %s124
    %s125 = sphi 0, %s122
    %s126 = sphi 0, %s125
    %s142 = sphi 0, %s126
  $region4: #{_input_fwd.1} parent=0 // loop_header_branch
    %12 = sbr.rel (%p10) target = $region8
  $region5: #{_input_fwd.1} parent=0 // loop_body
    %s14 = ssub.s32 %s9, 1
    %s15 = ssub.s32 %s9, 2
    %s25 = sadd.s32 1, %s18
    %p26 = scmp.ge.s32.totalorder %s25, 1
    %s27 = scalar_select %p26, 0, %s25
    %s28 = sadd.s32 1, %s17
    %s29 = scalar_select %p26, %s28, %s17
    %p30 = scmp.ge.s32.totalorder %s29, 1
    %s31 = scalar_select %p30, 0, %s29
    %s32 = sadd.s32 1, %s16
    %s33 = scalar_select %p30, %s32, %s16
    %p34 = scmp.ge.s32.totalorder %s33, 25
    %s35 = scalar_select %p34, 0, %s33
    %s36 = ssub.s32 %s16, %s35
    %s37 = ssub.s32 %s18, %s27
    %s38 = sor.u32 %s36, %s37
    %p39 = scmp.eq.s32.totalorder %s38, 0
    %s41 = sadd.s32 %s40, 1
    %s42 = scalar_select %p39, %s40, %s41
    %p45 = pneg %p39
    %p46 = scmp.eq.s32.totalorder %s9, 24
    %p47 = por %p45, %p46
    %p48 = scmp.ne.s32.totalorder %s40, %s43
    %p49 = scmp.eq.s32.totalorder %s9, 0
    %p50 = por %p48, %p49
    %p51 = scmp.ne.s32.totalorder %s40, %s43
    %p52 = scmp.eq.s32.totalorder %s14, 24
    %p53 = por %p51, %p52
    %p54 = scmp.ne.s32.totalorder %s43, %s44
    %p55 = scmp.eq.s32.totalorder %s14, 0
    %p56 = por %p54, %p55
    %p57 = scmp.ne.s32.totalorder %s43, %s44
    %p58 = scmp.eq.s32.totalorder %s15, 24
    %p59 = por %p57, %p58
    %p61 = scmp.ne.s32.totalorder %s44, %s60
    %p62 = scmp.eq.s32.totalorder %s15, 0
    %p63 = por %p61, %p62
    %s64 = ssub.s32 %s18, %s27
    %s65 = ssub.s32 %s17, %s31
    %s66 = sor.u32 %s64, %s65
    %p67 = scmp.eq.s32.totalorder %s66, 0
    %s69 = sadd.s32 %s68, 1
    %s70 = scalar_select %p67, %s68, %s69
    %p73 = pneg %p67
    %p74 = scmp.eq.s32.totalorder %s9, 24
    %p75 = por %p73, %p74
    %p76 = scmp.ne.s32.totalorder %s68, %s71
    %p77 = scmp.eq.s32.totalorder %s9, 0
    %p78 = por %p76, %p77
    %p79 = scmp.ne.s32.totalorder %s68, %s71
    %p80 = scmp.eq.s32.totalorder %s14, 24
    %p81 = por %p79, %p80
    %p82 = scmp.ne.s32.totalorder %s71, %s72
    %p83 = scmp.eq.s32.totalorder %s14, 0
    %p84 = por %p82, %p83
    %p85 = scmp.ne.s32.totalorder %s71, %s72
    %p86 = scmp.eq.s32.totalorder %s15, 24
    %p87 = por %p85, %p86
    %p89 = scmp.ne.s32.totalorder %s72, %s88
    %p90 = scmp.eq.s32.totalorder %s15, 0
    %p91 = por %p89, %p90
    %s92 = ssub.s32 %s17, %s31
    %p93 = scmp.eq.s32.totalorder %s92, 0
    %s95 = sadd.s32 %s94, 1
    %s96 = scalar_select %p93, %s94, %s95
    %p99 = pneg %p93
    %p100 = scmp.eq.s32.totalorder %s9, 24
    %p101 = por %p99, %p100
    %p102 = scmp.ne.s32.totalorder %s94, %s97
    %p103 = scmp.eq.s32.totalorder %s9, 0
    %p104 = por %p102, %p103
    %p105 = scmp.ne.s32.totalorder %s94, %s97
    %p106 = scmp.eq.s32.totalorder %s14, 24
    %p107 = por %p105, %p106
    %p108 = scmp.ne.s32.totalorder %s97, %s98
    %p109 = scmp.eq.s32.totalorder %s14, 0
    %p110 = por %p108, %p109
    %p111 = scmp.ne.s32.totalorder %s97, %s98
    %p112 = scmp.eq.s32.totalorder %s15, 24
    %p113 = por %p111, %p112
    %p115 = scmp.ne.s32.totalorder %s98, %s114
    %p116 = scmp.eq.s32.totalorder %s15, 0
    %p117 = por %p115, %p116
    %s118 = ssub.s32 %s16, %s35
    %s119 = ssub.s32 %s17, %s31
    %s120 = sor.u32 %s118, %s119
    %p121 = scmp.eq.s32.totalorder %s120, 0
    %s123 = sadd.s32 %s122, 1
    %s124 = scalar_select %p121, %s122, %s123
    %p127 = pneg %p121
    %p128 = scmp.eq.s32.totalorder %s9, 24
    %p129 = por %p127, %p128
    %p130 = scmp.ne.s32.totalorder %s122, %s125
    %p131 = scmp.eq.s32.totalorder %s9, 0
    %p132 = por %p130, %p131
    %p133 = scmp.ne.s32.totalorder %s122, %s125
    %p134 = scmp.eq.s32.totalorder %s14, 24
    %p135 = por %p133, %p134
    %p136 = scmp.ne.s32.totalorder %s125, %s126
    %p137 = scmp.eq.s32.totalorder %s14, 0
    %p138 = por %p136, %p137
    %p139 = scmp.ne.s32.totalorder %s125, %s126
    %p140 = scmp.eq.s32.totalorder %s15, 24
    %p141 = por %p139, %p140
    %p143 = scmp.ne.s32.totalorder %s126, %s142
    %p144 = scmp.eq.s32.totalorder %s15, 0
    %p145 = por %p143, %p144
    %p146 = scmp.le.s32.totalorder 1, %s9
    %p147 = scmp.lt.s32.totalorder %s9, 26
    %p148 = pnand %p146, %p147
    %p149 = pneg %p148
    // Predicated region
    $region9: #{_input_fwd.1} parent=5 // pred_check
      _
    $region10: #{_input_fwd.1} parent=5 // pred_check_branch
      %151 = sbr.rel (%p148) target = $region12
    $region11: #{_input_fwd.1} parent=5 // pred_region
      %s152 = ssub.s32 %s9, 1
      // Predicated region
      $region13: #{_input_fwd.1} parent=11 // pred_check
        %p153 = pneg %p84
      $region14: #{_input_fwd.1} parent=11 // pred_check_branch
        %155 = sbr.rel (%p153) target = $region16
      $region15: #{_input_fwd.1} parent=11 // pred_region
        %s156 = smul.u32 16, %s21
        %p157 = scmp.lt.s32.totalorder %s156, 15
        %s158 = scalar_select %p157, %s156, 15
        %p159 = scmp.lt.s32.totalorder %s20, 0
        %s160 = scalar_select %p159, %s20, 0
        %s161 = sadd.s32 %s160, %s158
        %s162 = smul.addr %s161, 4
        %s163 = scalar_lea.vmem %s1, %s162
        %s164 = smul.u32 16, %s21
      $region16: #{_input_fwd.1} parent=11 // pred_fallthru
        _
      // Predicated region
      $region17: #{_input_fwd.1} parent=11 // pred_check
        %p165 = pneg %p110
      $region18: #{_input_fwd.1} parent=11 // pred_check_branch
        %167 = sbr.rel (%p165) target = $region20
      $region19: #{_input_fwd.1} parent=11 // pred_region
        %p168 = scmp.lt.s32.totalorder %s20, 0
        %s169 = scalar_select %p168, %s20, 0
        %s170 = smul.addr %s169, 8
        %s171 = scalar_lea.vmem %s2, %s170
      $region20: #{_input_fwd.1} parent=11 // pred_fallthru
        _
    $region12: #{_input_fwd.1} parent=5 // pred_fallthru
      _
    %p172 = scmp.lt.s32.totalorder %s9, 25
    // Predicated region
    $region21: #{_input_fwd.1} parent=5 // pred_check
      %p173 = pneg %p172
    $region22: #{_input_fwd.1} parent=5 // pred_check_branch
      %175 = sbr.rel (%p173) target = $region24
    $region23: #{_input_fwd.1} parent=5 // pred_region
      // Predicated region
      $region25: #{_input_fwd.1} parent=23 // pred_check
        %p176 = pneg %p50
      $region26: #{_input_fwd.1} parent=23 // pred_check_branch
        %178 = sbr.rel (%p176) target = $region28
      $region27: #{_input_fwd.1} parent=23 // pred_region
        %s179 = smul.u32 64, %s16
        %p180 = scmp.lt.s32.totalorder %s179, 1599
        %s181 = scalar_select %p180, %s179, 1599
        %p182 = scmp.lt.s32.totalorder %s18, 0
        %s183 = scalar_select %p182, %s18, 0
        %s184 = sadd.s32 %s183, %s181
        %s185 = smul.addr %s184, 4
        %s186 = scalar_lea.vmem %s0, %s185
        %s187 = smul.u32 64, %s16
      $region28: #{_input_fwd.1} parent=23 // pred_fallthru
        _
    $region24: #{_input_fwd.1} parent=5 // pred_fallthru
      _
    %p188 = scmp.le.s32.totalorder 1, %s9
    %p189 = scmp.lt.s32.totalorder %s9, 26
    %p190 = pnand %p188, %p189
    %p191 = pneg %p190
    // Predicated region
    $region29: #{_input_fwd.1} parent=5 // pred_check
      _
    $region30: #{_input_fwd.1} parent=5 // pred_check_branch
      %193 = sbr.rel (%p190) target = $region32
    $region31: #{_input_fwd.1} parent=5 // pred_region
      %s194 = ssub.s32 %s9, 1
      %s195 = smul.u32 64, %s19
      %p196 = scmp.lt.s32.totalorder %s195, 1599
      %s197 = scalar_select %p196, %s195, 1599
      %p198 = scmp.lt.s32.totalorder %s21, 0
      %s199 = scalar_select %p198, %s21, 0
      %s200 = sadd.s32 %s199, %s197
      %s201 = smul.addr %s200, 4
      %s202 = scalar_lea.vmem %s0, %s201
      %p203 = pneg %p56
      %p204 = pneg %p53
      %s205 = smul.u32 16, %s21
      %p206 = scmp.lt.s32.totalorder %s205, 15
      %s207 = scalar_select %p206, %s205, 15
      %p208 = scmp.lt.s32.totalorder %s20, 0
      %s209 = scalar_select %p208, %s20, 0
      %s210 = sadd.s32 %s209, %s207
      %s211 = smul.addr %s210, 4
      %s212 = scalar_lea.vmem %s1, %s211
      %p213 = pneg %p84
      %p214 = pneg %p81
      %p215 = scmp.lt.s32.totalorder %s20, 0
      %s216 = scalar_select %p215, %s20, 0
      %s217 = smul.addr %s216, 8
      %s218 = scalar_lea.vmem %s2, %s217
      %p219 = pneg %p110
      %p220 = pneg %p107
      %p221 = pneg %p138
      %p222 = pneg %p135
      %s223 = smul.u32 64, %s19
      %p224 = scmp.lt.s32.totalorder %s223, 1599
      %s225 = scalar_select %p224, %s223, 1599
      %p226 = scmp.lt.s32.totalorder %s20, 0
      %s227 = scalar_select %p226, %s20, 0
      %s228 = sadd.s32 %s227, %s225
      %s229 = smul.addr %s228, 4
      %s230 = scalar_lea.vmem %s3, %s229
      %s231 = smul.u32 64, %s19
      %p232 = scmp.lt.s32.totalorder %s231, 1599
      %s233 = scalar_select %p232, %s231, 1599
      %p234 = scmp.lt.s32.totalorder %s21, 0
      %s235 = scalar_select %p234, %s21, 0
      %s236 = sadd.s32 %s235, %s233
      %s237 = smul.addr %s236, 4
      %s238 = scalar_lea.vmem %s0, %s237
      %s239 = smul.u32 64, %s19
      %s240 = smul.u32 16, %s21
      %p241 = scmp.lt.s32.totalorder %s240, 15
      %s242 = scalar_select %p241, %s240, 15
      %p243 = scmp.lt.s32.totalorder %s20, 0
      %s244 = scalar_select %p243, %s20, 0
      %s245 = sadd.s32 %s244, %s242
      %s246 = smul.addr %s245, 4
      %s247 = scalar_lea.vmem %s1, %s246
      %s248 = smul.u32 16, %s21
      %p249 = scmp.lt.s32.totalorder %s20, 0
      %s250 = scalar_select %p249, %s20, 0
      %s251 = smul.addr %s250, 8
      %s252 = scalar_lea.vmem %s2, %s251
      %s253 = smul.u32 64, %s19
      %p254 = scmp.lt.s32.totalorder %s253, 1599
      %s255 = scalar_select %p254, %s253, 1599
      %p256 = scmp.lt.s32.totalorder %s20, 0
      %s257 = scalar_select %p256, %s20, 0
      %s258 = sadd.s32 %s257, %s255
      %s259 = smul.addr %s258, 4
      %s260 = scalar_lea.vmem %s3, %s259
      %s261 = smul.u32 64, %s19
      %p263 = scmp.eq.s32.totalorder %s21, 0
      // Predicated region
      $region33: #{_input_fwd.1} parent=31 // pred_check
        %p264 = pneg %p263
      $region34: #{_input_fwd.1} parent=31 // pred_check_branch
        %266 = sbr.rel (%p264) target = $region36
      $region35: #{_input_fwd.1} parent=31 // pred_region
        %267 = vst [vmem:[#allocation2] sm:$0xff] 0.0
        %268 = vst [vmem:[#allocation2 + $0x8] sm:$0xff] 0.0
        %269 = vst [vmem:[#allocation2 + $0x10] sm:$0xff] 0.0
        %270 = vst [vmem:[#allocation2 + $0x18] sm:$0xff] 0.0
        %271 = vst [vmem:[#allocation2 + $0x20] sm:$0xff] 0.0
        %272 = vst [vmem:[#allocation2 + $0x28] sm:$0xff] 0.0
        %273 = vst [vmem:[#allocation2 + $0x30] sm:$0xff] 0.0
        %274 = vst [vmem:[#allocation2 + $0x38] sm:$0xff] 0.0
        %275 = vst [vmem:[#allocation2 + $0x40] sm:$0xff] 0.0
        %276 = vst [vmem:[#allocation2 + $0x48] sm:$0xff] 0.0
        %277 = vst [vmem:[#allocation2 + $0x50] sm:$0xff] 0.0
        %278 = vst [vmem:[#allocation2 + $0x58] sm:$0xff] 0.0
        %279 = vst [vmem:[#allocation2 + $0x60] sm:$0xff] 0.0
        %280 = vst [vmem:[#allocation2 + $0x68] sm:$0xff] 0.0
        %281 = vst [vmem:[#allocation2 + $0x70] sm:$0xff] 0.0
        %282 = vst [vmem:[#allocation2 + $0x78] sm:$0xff] 0.0
        %283 = vst [vmem:[#allocation2 + $0x80] sm:$0xff] 0.0
        %284 = vst [vmem:[#allocation2 + $0x88] sm:$0xff] 0.0
        %285 = vst [vmem:[#allocation2 + $0x90] sm:$0xff] 0.0
        %286 = vst [vmem:[#allocation2 + $0x98] sm:$0xff] 0.0
        %287 = vst [vmem:[#allocation2 + $0xa0] sm:$0xff] 0.0
        %288 = vst [vmem:[#allocation2 + $0xa8] sm:$0xff] 0.0
        %289 = vst [vmem:[#allocation2 + $0xb0] sm:$0xff] 0.0
        %290 = vst [vmem:[#allocation2 + $0xb8] sm:$0xff] 0.0
        %291 = vst [vmem:[#allocation2 + $0xc0] sm:$0xff] 0.0
        %292 = vst [vmem:[#allocation2 + $0xc8] sm:$0xff] 0.0
        %293 = vst [vmem:[#allocation2 + $0xd0] sm:$0xff] 0.0
        %294 = vst [vmem:[#allocation2 + $0xd8] sm:$0xff] 0.0
        %295 = vst [vmem:[#allocation2 + $0xe0] sm:$0xff] 0.0
        %296 = vst [vmem:[#allocation2 + $0xe8] sm:$0xff] 0.0
        %297 = vst [vmem:[#allocation2 + $0xf0] sm:$0xff] 0.0
        %298 = vst [vmem:[#allocation2 + $0xf8] sm:$0xff] 0.0
        %299 = vst [vmem:[#allocation2 + $0x100] sm:$0xff] 0.0
        %300 = vst [vmem:[#allocation2 + $0x108] sm:$0xff] 0.0
        %301 = vst [vmem:[#allocation2 + $0x110] sm:$0xff] 0.0
        %302 = vst [vmem:[#allocation2 + $0x118] sm:$0xff] 0.0
        %303 = vst [vmem:[#allocation2 + $0x120] sm:$0xff] 0.0
        %304 = vst [vmem:[#allocation2 + $0x128] sm:$0xff] 0.0
        %305 = vst [vmem:[#allocation2 + $0x130] sm:$0xff] 0.0
        %306 = vst [vmem:[#allocation2 + $0x138] sm:$0xff] 0.0
        %307 = vst [vmem:[#allocation2 + $0x140] sm:$0xff] 0.0
        %308 = vst [vmem:[#allocation2 + $0x148] sm:$0xff] 0.0
        %309 = vst [vmem:[#allocation2 + $0x150] sm:$0xff] 0.0
        %310 = vst [vmem:[#allocation2 + $0x158] sm:$0xff] 0.0
        %311 = vst [vmem:[#allocation2 + $0x160] sm:$0xff] 0.0
        %312 = vst [vmem:[#allocation2 + $0x168] sm:$0xff] 0.0
        %313 = vst [vmem:[#allocation2 + $0x170] sm:$0xff] 0.0
        %314 = vst [vmem:[#allocation2 + $0x178] sm:$0xff] 0.0
        %315 = vst [vmem:[#allocation2 + $0x180] sm:$0xff] 0.0
        %316 = vst [vmem:[#allocation2 + $0x188] sm:$0xff] 0.0
        %317 = vst [vmem:[#allocation2 + $0x190] sm:$0xff] 0.0
        %318 = vst [vmem:[#allocation2 + $0x198] sm:$0xff] 0.0
        %319 = vst [vmem:[#allocation2 + $0x1a0] sm:$0xff] 0.0
        %320 = vst [vmem:[#allocation2 + $0x1a8] sm:$0xff] 0.0
        %321 = vst [vmem:[#allocation2 + $0x1b0] sm:$0xff] 0.0
        %322 = vst [vmem:[#allocation2 + $0x1b8] sm:$0xff] 0.0
        %323 = vst [vmem:[#allocation2 + $0x1c0] sm:$0xff] 0.0
        %324 = vst [vmem:[#allocation2 + $0x1c8] sm:$0xff] 0.0
        %325 = vst [vmem:[#allocation2 + $0x1d0] sm:$0xff] 0.0
        %326 = vst [vmem:[#allocation2 + $0x1d8] sm:$0xff] 0.0
        %327 = vst [vmem:[#allocation2 + $0x1e0] sm:$0xff] 0.0
        %328 = vst [vmem:[#allocation2 + $0x1e8] sm:$0xff] 0.0
        %329 = vst [vmem:[#allocation2 + $0x1f0] sm:$0xff] 0.0
        %330 = vst [vmem:[#allocation2 + $0x1f8] sm:$0xff] 0.0
      $region36: #{_input_fwd.1} parent=31 // pred_fallthru
        _
      %v331 = vld [vmem:[#allocation2] sm:$0xff]
      %v332 = vld [vmem:[#allocation2 + $0x8] sm:$0xff]
      %v333 = vld [vmem:[#allocation2 + $0x10] sm:$0xff]
      %v334 = vld [vmem:[#allocation2 + $0x18] sm:$0xff]
      %v335 = vld [vmem:[#allocation2 + $0x20] sm:$0xff]
      %v336 = vld [vmem:[#allocation2 + $0x28] sm:$0xff]
      %v337 = vld [vmem:[#allocation2 + $0x30] sm:$0xff]
      %v338 = vld [vmem:[#allocation2 + $0x38] sm:$0xff]
      %v339 = vld [vmem:[#allocation2 + $0x40] sm:$0xff]
      %v340 = vld [vmem:[#allocation2 + $0x48] sm:$0xff]
      %v341 = vld [vmem:[#allocation2 + $0x50] sm:$0xff]
      %v342 = vld [vmem:[#allocation2 + $0x58] sm:$0xff]
      %v343 = vld [vmem:[#allocation2 + $0x60] sm:$0xff]
      %v344 = vld [vmem:[#allocation2 + $0x68] sm:$0xff]
      %v345 = vld [vmem:[#allocation2 + $0x70] sm:$0xff]
      %v346 = vld [vmem:[#allocation2 + $0x78] sm:$0xff]
      %v347 = vld [vmem:[#allocation2 + $0x80] sm:$0xff]
      %v348 = vld [vmem:[#allocation2 + $0x88] sm:$0xff]
      %v349 = vld [vmem:[#allocation2 + $0x90] sm:$0xff]
      %v350 = vld [vmem:[#allocation2 + $0x98] sm:$0xff]
      %v351 = vld [vmem:[#allocation2 + $0xa0] sm:$0xff]
      %v352 = vld [vmem:[#allocation2 + $0xa8] sm:$0xff]
      %v353 = vld [vmem:[#allocation2 + $0xb0] sm:$0xff]
      %v354 = vld [vmem:[#allocation2 + $0xb8] sm:$0xff]
      %v355 = vld [vmem:[#allocation2 + $0xc0] sm:$0xff]
      %v356 = vld [vmem:[#allocation2 + $0xc8] sm:$0xff]
      %v357 = vld [vmem:[#allocation2 + $0xd0] sm:$0xff]
      %v358 = vld [vmem:[#allocation2 + $0xd8] sm:$0xff]
      %v359 = vld [vmem:[#allocation2 + $0xe0] sm:$0xff]
      %v360 = vld [vmem:[#allocation2 + $0xe8] sm:$0xff]
      %v361 = vld [vmem:[#allocation2 + $0xf0] sm:$0xff]
      %v362 = vld [vmem:[#allocation2 + $0xf8] sm:$0xff]
      %v363 = vld [vmem:[#allocation2 + $0x100] sm:$0xff]
      %v364 = vld [vmem:[#allocation2 + $0x108] sm:$0xff]
      %v365 = vld [vmem:[#allocation2 + $0x110] sm:$0xff]
      %v366 = vld [vmem:[#allocation2 + $0x118] sm:$0xff]
      %v367 = vld [vmem:[#allocation2 + $0x120] sm:$0xff]
      %v368 = vld [vmem:[#allocation2 + $0x128] sm:$0xff]
      %v369 = vld [vmem:[#allocation2 + $0x130] sm:$0xff]
      %v370 = vld [vmem:[#allocation2 + $0x138] sm:$0xff]
      %v371 = vld [vmem:[#allocation2 + $0x140] sm:$0xff]
      %v372 = vld [vmem:[#allocation2 + $0x148] sm:$0xff]
      %v373 = vld [vmem:[#allocation2 + $0x150] sm:$0xff]
      %v374 = vld [vmem:[#allocation2 + $0x158] sm:$0xff]
      %v375 = vld [vmem:[#allocation2 + $0x160] sm:$0xff]
      %v376 = vld [vmem:[#allocation2 + $0x168] sm:$0xff]
      %v377 = vld [vmem:[#allocation2 + $0x170] sm:$0xff]
      %v378 = vld [vmem:[#allocation2 + $0x178] sm:$0xff]
      %v379 = vld [vmem:[#allocation2 + $0x180] sm:$0xff]
      %v380 = vld [vmem:[#allocation2 + $0x188] sm:$0xff]
      %v381 = vld [vmem:[#allocation2 + $0x190] sm:$0xff]
      %v382 = vld [vmem:[#allocation2 + $0x198] sm:$0xff]
      %v383 = vld [vmem:[#allocation2 + $0x1a0] sm:$0xff]
      %v384 = vld [vmem:[#allocation2 + $0x1a8] sm:$0xff]
      %v385 = vld [vmem:[#allocation2 + $0x1b0] sm:$0xff]
      %v386 = vld [vmem:[#allocation2 + $0x1b8] sm:$0xff]
      %v387 = vld [vmem:[#allocation2 + $0x1c0] sm:$0xff]
      %v388 = vld [vmem:[#allocation2 + $0x1c8] sm:$0xff]
      %v389 = vld [vmem:[#allocation2 + $0x1d0] sm:$0xff]
      %v390 = vld [vmem:[#allocation2 + $0x1d8] sm:$0xff]
      %v391 = vld [vmem:[#allocation2 + $0x1e0] sm:$0xff]
      %v392 = vld [vmem:[#allocation2 + $0x1e8] sm:$0xff]
      %v393 = vld [vmem:[#allocation2 + $0x1f0] sm:$0xff]
      %v394 = vld [vmem:[#allocation2 + $0x1f8] sm:$0xff]
      %v395 = vld [vmem:[%s238] sm:$0xf]
      %v396 = vld [vmem:[%s238 + $0x4] sm:$0xf]
      %v397 = vld [vmem:[%s238 + $0x8] sm:$0xf]
      %v398 = vld [vmem:[%s238 + $0xc] sm:$0xf]
      %v399 = vld [vmem:[%s238 + $0x10] sm:$0xf]
      %v400 = vld [vmem:[%s238 + $0x14] sm:$0xf]
      %v401 = vld [vmem:[%s238 + $0x18] sm:$0xf]
      %v402 = vld [vmem:[%s238 + $0x1c] sm:$0xf]
      %v403 = vld [vmem:[%s238 + $0x20] sm:$0xf]
      %v404 = vld [vmem:[%s238 + $0x24] sm:$0xf]
      %v405 = vld [vmem:[%s238 + $0x28] sm:$0xf]
      %v406 = vld [vmem:[%s238 + $0x2c] sm:$0xf]
      %v407 = vld [vmem:[%s238 + $0x30] sm:$0xf]
      %v408 = vld [vmem:[%s238 + $0x34] sm:$0xf]
      %v409 = vld [vmem:[%s238 + $0x38] sm:$0xf]
      %v410 = vld [vmem:[%s238 + $0x3c] sm:$0xf]
      %v411 = vld [vmem:[%s238 + $0x40] sm:$0xf]
      %v412 = vld [vmem:[%s238 + $0x44] sm:$0xf]
      %v413 = vld [vmem:[%s238 + $0x48] sm:$0xf]
      %v414 = vld [vmem:[%s238 + $0x4c] sm:$0xf]
      %v415 = vld [vmem:[%s238 + $0x50] sm:$0xf]
      %v416 = vld [vmem:[%s238 + $0x54] sm:$0xf]
      %v417 = vld [vmem:[%s238 + $0x58] sm:$0xf]
      %v418 = vld [vmem:[%s238 + $0x5c] sm:$0xf]
      %v419 = vld [vmem:[%s238 + $0x60] sm:$0xf]
      %v420 = vld [vmem:[%s238 + $0x64] sm:$0xf]
      %v421 = vld [vmem:[%s238 + $0x68] sm:$0xf]
      %v422 = vld [vmem:[%s238 + $0x6c] sm:$0xf]
      %v423 = vld [vmem:[%s238 + $0x70] sm:$0xf]
      %v424 = vld [vmem:[%s238 + $0x74] sm:$0xf]
      %v425 = vld [vmem:[%s238 + $0x78] sm:$0xf]
      %v426 = vld [vmem:[%s238 + $0x7c] sm:$0xf]
      %v427 = vld [vmem:[%s238 + $0x80] sm:$0xf]
      %v428 = vld [vmem:[%s238 + $0x84] sm:$0xf]
      %v429 = vld [vmem:[%s238 + $0x88] sm:$0xf]
      %v430 = vld [vmem:[%s238 + $0x8c] sm:$0xf]
      %v431 = vld [vmem:[%s238 + $0x90] sm:$0xf]
      %v432 = vld [vmem:[%s238 + $0x94] sm:$0xf]
      %v433 = vld [vmem:[%s238 + $0x98] sm:$0xf]
      %v434 = vld [vmem:[%s238 + $0x9c] sm:$0xf]
      %v435 = vld [vmem:[%s238 + $0xa0] sm:$0xf]
      %v436 = vld [vmem:[%s238 + $0xa4] sm:$0xf]
      %v437 = vld [vmem:[%s238 + $0xa8] sm:$0xf]
      %v438 = vld [vmem:[%s238 + $0xac] sm:$0xf]
      %v439 = vld [vmem:[%s238 + $0xb0] sm:$0xf]
      %v440 = vld [vmem:[%s238 + $0xb4] sm:$0xf]
      %v441 = vld [vmem:[%s238 + $0xb8] sm:$0xf]
      %v442 = vld [vmem:[%s238 + $0xbc] sm:$0xf]
      %v443 = vld [vmem:[%s238 + $0xc0] sm:$0xf]
      %v444 = vld [vmem:[%s238 + $0xc4] sm:$0xf]
      %v445 = vld [vmem:[%s238 + $0xc8] sm:$0xf]
      %v446 = vld [vmem:[%s238 + $0xcc] sm:$0xf]
      %v447 = vld [vmem:[%s238 + $0xd0] sm:$0xf]
      %v448 = vld [vmem:[%s238 + $0xd4] sm:$0xf]
      %v449 = vld [vmem:[%s238 + $0xd8] sm:$0xf]
      %v450 = vld [vmem:[%s238 + $0xdc] sm:$0xf]
      %v451 = vld [vmem:[%s238 + $0xe0] sm:$0xf]
      %v452 = vld [vmem:[%s238 + $0xe4] sm:$0xf]
      %v453 = vld [vmem:[%s238 + $0xe8] sm:$0xf]
      %v454 = vld [vmem:[%s238 + $0xec] sm:$0xf]
      %v455 = vld [vmem:[%s238 + $0xf0] sm:$0xf]
      %v456 = vld [vmem:[%s238 + $0xf4] sm:$0xf]
      %v457 = vld [vmem:[%s238 + $0xf8] sm:$0xf]
      %v458 = vld [vmem:[%s238 + $0xfc] sm:$0xf]
      %v459 = vld [vmem:[%s247] sm:$0xf]
      %v460 = vld [vmem:[%s247 + $0x4] sm:$0xf]
      %v461 = vld [vmem:[%s247 + $0x8] sm:$0xf]
      %v462 = vld [vmem:[%s247 + $0xc] sm:$0xf]
      %v463 = vld [vmem:[%s247 + $0x10] sm:$0xf]
      %v464 = vld [vmem:[%s247 + $0x14] sm:$0xf]
      %v465 = vld [vmem:[%s247 + $0x18] sm:$0xf]
      %v466 = vld [vmem:[%s247 + $0x1c] sm:$0xf]
      %v467 = vld [vmem:[%s247 + $0x20] sm:$0xf]
      %v468 = vld [vmem:[%s247 + $0x24] sm:$0xf]
      %v469 = vld [vmem:[%s247 + $0x28] sm:$0xf]
      %v470 = vld [vmem:[%s247 + $0x2c] sm:$0xf]
      %v471 = vld [vmem:[%s247 + $0x30] sm:$0xf]
      %v472 = vld [vmem:[%s247 + $0x34] sm:$0xf]
      %v473 = vld [vmem:[%s247 + $0x38] sm:$0xf]
      %v474 = vld [vmem:[%s247 + $0x3c] sm:$0xf]
      %v539 = vunpack.c.l.b16 %v395
      %v540 = vunpack.c.l.b16 %v396
      %v541 = vunpack.c.l.b16 %v397
      %v542 = vunpack.c.l.b16 %v398
      %v543 = vunpack.c.l.b16 %v399
      %v544 = vunpack.c.l.b16 %v400
      %v545 = vunpack.c.l.b16 %v401
      %v546 = vunpack.c.l.b16 %v402
      %v547 = vunpack.c.l.b16 %v403
      %v548 = vunpack.c.l.b16 %v404
      %v549 = vunpack.c.l.b16 %v405
      %v550 = vunpack.c.l.b16 %v406
      %v551 = vunpack.c.l.b16 %v407
      %v552 = vunpack.c.l.b16 %v408
      %v553 = vunpack.c.l.b16 %v409
      %v554 = vunpack.c.l.b16 %v410
      %v555 = vunpack.c.l.b16 %v411
      %v556 = vunpack.c.l.b16 %v412
      %v557 = vunpack.c.l.b16 %v413
      %v558 = vunpack.c.l.b16 %v414
      %v559 = vunpack.c.l.b16 %v415
      %v560 = vunpack.c.l.b16 %v416
      %v561 = vunpack.c.l.b16 %v417
      %v562 = vunpack.c.l.b16 %v418
      %v563 = vunpack.c.l.b16 %v419
      %v564 = vunpack.c.l.b16 %v420
      %v565 = vunpack.c.l.b16 %v421
      %v566 = vunpack.c.l.b16 %v422
      %v567 = vunpack.c.l.b16 %v423
      %v568 = vunpack.c.l.b16 %v424
      %v569 = vunpack.c.l.b16 %v425
      %v570 = vunpack.c.l.b16 %v426
      %v571 = vunpack.c.l.b16 %v427
      %v572 = vunpack.c.l.b16 %v428
      %v573 = vunpack.c.l.b16 %v429
      %v574 = vunpack.c.l.b16 %v430
      %v575 = vunpack.c.l.b16 %v431
      %v576 = vunpack.c.l.b16 %v432
      %v577 = vunpack.c.l.b16 %v433
      %v578 = vunpack.c.l.b16 %v434
      %v579 = vunpack.c.l.b16 %v435
      %v580 = vunpack.c.l.b16 %v436
      %v581 = vunpack.c.l.b16 %v437
      %v582 = vunpack.c.l.b16 %v438
      %v583 = vunpack.c.l.b16 %v439
      %v584 = vunpack.c.l.b16 %v440
      %v585 = vunpack.c.l.b16 %v441
      %v586 = vunpack.c.l.b16 %v442
      %v587 = vunpack.c.l.b16 %v443
      %v588 = vunpack.c.l.b16 %v444
      %v589 = vunpack.c.l.b16 %v445
      %v590 = vunpack.c.l.b16 %v446
      %v591 = vunpack.c.l.b16 %v447
      %v592 = vunpack.c.l.b16 %v448
      %v593 = vunpack.c.l.b16 %v449
      %v594 = vunpack.c.l.b16 %v450
      %v595 = vunpack.c.l.b16 %v451
      %v596 = vunpack.c.l.b16 %v452
      %v597 = vunpack.c.l.b16 %v453
      %v598 = vunpack.c.l.b16 %v454
      %v599 = vunpack.c.l.b16 %v455
      %v600 = vunpack.c.l.b16 %v456
      %v601 = vunpack.c.l.b16 %v457
      %v602 = vunpack.c.l.b16 %v458
      %v603 = vpack.c.b16 %v540, %v539
      %v604 = vpack.c.b16 %v542, %v541
      %v605 = vpack.c.b16 %v544, %v543
      %v606 = vpack.c.b16 %v546, %v545
      %v607 = vpack.c.b16 %v548, %v547
      %v608 = vpack.c.b16 %v550, %v549
      %v609 = vpack.c.b16 %v552, %v551
      %v610 = vpack.c.b16 %v554, %v553
      %v611 = vpack.c.b16 %v556, %v555
      %v612 = vpack.c.b16 %v558, %v557
      %v613 = vpack.c.b16 %v560, %v559
      %v614 = vpack.c.b16 %v562, %v561
      %v615 = vpack.c.b16 %v564, %v563
      %v616 = vpack.c.b16 %v566, %v565
      %v617 = vpack.c.b16 %v568, %v567
      %v618 = vpack.c.b16 %v570, %v569
      %v619 = vpack.c.b16 %v572, %v571
      %v620 = vpack.c.b16 %v574, %v573
      %v621 = vpack.c.b16 %v576, %v575
      %v622 = vpack.c.b16 %v578, %v577
      %v623 = vpack.c.b16 %v580, %v579
      %v624 = vpack.c.b16 %v582, %v581
      %v625 = vpack.c.b16 %v584, %v583
      %v626 = vpack.c.b16 %v586, %v585
      %v627 = vpack.c.b16 %v588, %v587
      %v628 = vpack.c.b16 %v590, %v589
      %v629 = vpack.c.b16 %v592, %v591
      %v630 = vpack.c.b16 %v594, %v593
      %v631 = vpack.c.b16 %v596, %v595
      %v632 = vpack.c.b16 %v598, %v597
      %v633 = vpack.c.b16 %v600, %v599
      %v634 = vpack.c.b16 %v602, %v601
      %v683 = vunpack.c.l.b16 %v459
      %v684 = vunpack.c.l.b16 %v460
      %v685 = vunpack.c.l.b16 %v461
      %v686 = vunpack.c.l.b16 %v462
      %v687 = vunpack.c.l.b16 %v463
      %v688 = vunpack.c.l.b16 %v464
      %v689 = vunpack.c.l.b16 %v465
      %v690 = vunpack.c.l.b16 %v466
      %v691 = vunpack.c.l.b16 %v467
      %v692 = vunpack.c.l.b16 %v468
      %v693 = vunpack.c.l.b16 %v469
      %v694 = vunpack.c.l.b16 %v470
      %v695 = vunpack.c.l.b16 %v471
      %v696 = vunpack.c.l.b16 %v472
      %v697 = vunpack.c.l.b16 %v473
      %v698 = vunpack.c.l.b16 %v474
      %v699 = vpack.c.b16 %v684, %v683
      %v700 = vpack.c.b16 %v686, %v685
      %v701 = vpack.c.b16 %v688, %v687
      %v702 = vpack.c.b16 %v690, %v689
      %v703 = vpack.c.b16 %v692, %v691
      %v704 = vpack.c.b16 %v694, %v693
      %v705 = vpack.c.b16 %v696, %v695
      %v706 = vpack.c.b16 %v698, %v697
      %715 = vmatprep.subr.bf16.mxu0 0
      %716 = vmatpush1.bf16.msra.mxu0 %v699
      %717 = vmatprep.subr.bf16.mxu0 0
      %718 = vmatpush1.bf16.msra.mxu0 %v700
      %719 = vmatprep.subr.bf16.mxu0 0
      %720 = vmatpush1.bf16.msra.mxu0 %v701
      %721 = vmatprep.subr.bf16.mxu0 0
      %722 = vmatpush1.bf16.msra.mxu0 %v702
      %723 = vmatprep.subr.bf16.mxu0 0
      %724 = vmatpush1.bf16.msra.mxu0 %v703
      %725 = vmatprep.subr.bf16.mxu0 0
      %726 = vmatpush1.bf16.msra.mxu0 %v704
      %727 = vmatprep.subr.bf16.mxu0 0
      %728 = vmatpush1.bf16.msra.mxu0 %v705
      %729 = vmatprep.subr.bf16.mxu0 0
      %730 = vmatpush1.bf16.msra.mxu0 %v706
      %731 = vmatprep.subr.bf16.mxu0 0
      %732 = vmatpush1.bf16.msra.mxu0 0
      %733 = vmatprep.subr.bf16.mxu0 0
      %734 = vmatpush1.bf16.msra.mxu0 0
      %735 = vmatprep.subr.bf16.mxu0 0
      %736 = vmatpush1.bf16.msra.mxu0 0
      %737 = vmatprep.subr.bf16.mxu0 0
      %738 = vmatpush1.bf16.msra.mxu0 0
      %739 = vmatprep.subr.bf16.mxu0 0
      %740 = vmatpush1.bf16.msra.mxu0 0
      %741 = vmatprep.subr.bf16.mxu0 0
      %742 = vmatpush1.bf16.msra.mxu0 0
      %743 = vmatprep.subr.bf16.mxu0 0
      %744 = vmatpush1.bf16.msra.mxu0 0
      %745 = vmatprep.subr.bf16.mxu0 0
      %746 = vmatpush1.bf16.msra.mxu0 0
      %747 = vmatprep.mubr.bf16.mxu0 0
      %748 = vmatmul.mubr.bf16.gmra.mrb[0].mxu0 %v603
      %v749 = vpop.f32.mrb[0].mxu0
      %v750 = vadd.f32 0.0, %v749
      %v751 = vpop.f32.mrb[0].mxu0
      %v752 = vpop.f32.mrb[0].mxu0
      %v753 = vadd.f32 0.0, %v752
      %v754 = vpop.f32.mrb[0].mxu0
      %755 = vmatprep.mubr.bf16.mxu0 0
      %756 = vmatmul.mubr.bf16.gmra.mrb[0].mxu0 %v604
      %v757 = vpop.f32.mrb[0].mxu0
      %v758 = vadd.f32 0.0, %v757
      %v759 = vpop.f32.mrb[0].mxu0
      %v760 = vpop.f32.mrb[0].mxu0
      %v761 = vadd.f32 0.0, %v760
      %v762 = vpop.f32.mrb[0].mxu0
      %763 = vmatprep.mubr.bf16.mxu0 0
      %764 = vmatmul.mubr.bf16.gmra.mrb[0].mxu0 %v605
      %v765 = vpop.f32.mrb[0].mxu0
      %v766 = vadd.f32 0.0, %v765
      %v767 = vpop.f32.mrb[0].mxu0
      %v768 = vpop.f32.mrb[0].mxu0
      %v769 = vadd.f32 0.0, %v768
      %v770 = vpop.f32.mrb[0].mxu0
      %771 = vmatprep.mubr.bf16.mxu0 0
      %772 = vmatmul.mubr.bf16.gmra.mrb[0].mxu0 %v606
      %v773 = vpop.f32.mrb[0].mxu0
      %v774 = vadd.f32 0.0, %v773
      %v775 = vpop.f32.mrb[0].mxu0
      %v776 = vpop.f32.mrb[0].mxu0
      %v777 = vadd.f32 0.0, %v776
      %v778 = vpop.f32.mrb[0].mxu0
      %779 = vmatprep.mubr.bf16.mxu0 0
      %780 = vmatmul.mubr.bf16.gmra.mrb[0].mxu0 %v607
      %v781 = vpop.f32.mrb[0].mxu0
      %v782 = vadd.f32 0.0, %v781
      %v783 = vpop.f32.mrb[0].mxu0
      %v784 = vpop.f32.mrb[0].mxu0
      %v785 = vadd.f32 0.0, %v784
      %v786 = vpop.f32.mrb[0].mxu0
      %787 = vmatprep.mubr.bf16.mxu0 0
      %788 = vmatmul.mubr.bf16.gmra.mrb[0].mxu0 %v608
      %v789 = vpop.f32.mrb[0].mxu0
      %v790 = vadd.f32 0.0, %v789
      %v791 = vpop.f32.mrb[0].mxu0
      %v792 = vpop.f32.mrb[0].mxu0
      %v793 = vadd.f32 0.0, %v792
      %v794 = vpop.f32.mrb[0].mxu0
      %795 = vmatprep.mubr.bf16.mxu0 0
      %796 = vmatmul.mubr.bf16.gmra.mrb[0].mxu0 %v609
      %v797 = vpop.f32.mrb[0].mxu0
      %v798 = vadd.f32 0.0, %v797
      %v799 = vpop.f32.mrb[0].mxu0
      %v800 = vpop.f32.mrb[0].mxu0
      %v801 = vadd.f32 0.0, %v800
      %v802 = vpop.f32.mrb[0].mxu0
      %803 = vmatprep.mubr.bf16.mxu0 0
      %804 = vmatmul.mubr.bf16.gmra.mrb[0].mxu0 %v610
      %v805 = vpop.f32.mrb[0].mxu0
      %v806 = vadd.f32 0.0, %v805
      %v807 = vpop.f32.mrb[0].mxu0
      %v808 = vpop.f32.mrb[0].mxu0
      %v809 = vadd.f32 0.0, %v808
      %v810 = vpop.f32.mrb[0].mxu0
      %811 = vmatprep.mubr.bf16.mxu0 0
      %812 = vmatmul.mubr.bf16.gmra.mrb[0].mxu0 %v611
      %v813 = vpop.f32.mrb[0].mxu0
      %v814 = vadd.f32 0.0, %v813
      %v815 = vpop.f32.mrb[0].mxu0
      %v816 = vpop.f32.mrb[0].mxu0
      %v817 = vadd.f32 0.0, %v816
      %v818 = vpop.f32.mrb[0].mxu0
      %819 = vmatprep.mubr.bf16.mxu0 0
      %820 = vmatmul.mubr.bf16.gmra.mrb[0].mxu0 %v612
      %v821 = vpop.f32.mrb[0].mxu0
      %v822 = vadd.f32 0.0, %v821
      %v823 = vpop.f32.mrb[0].mxu0
      %v824 = vpop.f32.mrb[0].mxu0
      %v825 = vadd.f32 0.0, %v824
      %v826 = vpop.f32.mrb[0].mxu0
      %827 = vmatprep.mubr.bf16.mxu0 0
      %828 = vmatmul.mubr.bf16.gmra.mrb[0].mxu0 %v613
      %v829 = vpop.f32.mrb[0].mxu0
      %v830 = vadd.f32 0.0, %v829
      %v831 = vpop.f32.mrb[0].mxu0
      %v832 = vpop.f32.mrb[0].mxu0
      %v833 = vadd.f32 0.0, %v832
      %v834 = vpop.f32.mrb[0].mxu0
      %835 = vmatprep.mubr.bf16.mxu0 0
      %836 = vmatmul.mubr.bf16.gmra.mrb[0].mxu0 %v614
      %v837 = vpop.f32.mrb[0].mxu0
      %v838 = vadd.f32 0.0, %v837
      %v839 = vpop.f32.mrb[0].mxu0
      %v840 = vpop.f32.mrb[0].mxu0
      %v841 = vadd.f32 0.0, %v840
      %v842 = vpop.f32.mrb[0].mxu0
      %843 = vmatprep.mubr.bf16.mxu0 0
      %844 = vmatmul.mubr.bf16.gmra.mrb[0].mxu0 %v615
      %v845 = vpop.f32.mrb[0].mxu0
      %v846 = vadd.f32 0.0, %v845
      %v847 = vpop.f32.mrb[0].mxu0
      %v848 = vpop.f32.mrb[0].mxu0
      %v849 = vadd.f32 0.0, %v848
      %v850 = vpop.f32.mrb[0].mxu0
      %851 = vmatprep.mubr.bf16.mxu0 0
      %852 = vmatmul.mubr.bf16.gmra.mrb[0].mxu0 %v616
      %v853 = vpop.f32.mrb[0].mxu0
      %v854 = vadd.f32 0.0, %v853
      %v855 = vpop.f32.mrb[0].mxu0
      %v856 = vpop.f32.mrb[0].mxu0
      %v857 = vadd.f32 0.0, %v856
      %v858 = vpop.f32.mrb[0].mxu0
      %859 = vmatprep.mubr.bf16.mxu0 0
      %860 = vmatmul.mubr.bf16.gmra.mrb[0].mxu0 %v617
      %v861 = vpop.f32.mrb[0].mxu0
      %v862 = vadd.f32 0.0, %v861
      %v863 = vpop.f32.mrb[0].mxu0
      %v864 = vpop.f32.mrb[0].mxu0
      %v865 = vadd.f32 0.0, %v864
      %v866 = vpop.f32.mrb[0].mxu0
      %867 = vmatprep.mubr.bf16.mxu0 0
      %868 = vmatmul.mubr.bf16.gmra.mrb[0].mxu0 %v618
      %v869 = vpop.f32.mrb[0].mxu0
      %v870 = vadd.f32 0.0, %v869
      %v871 = vpop.f32.mrb[0].mxu0
      %v872 = vpop.f32.mrb[0].mxu0
      %v873 = vadd.f32 0.0, %v872
      %v874 = vpop.f32.mrb[0].mxu0
      %875 = vmatprep.mubr.bf16.mxu0 0
      %876 = vmatmul.mubr.bf16.gmra.mrb[0].mxu0 %v619
      %v877 = vpop.f32.mrb[0].mxu0
      %v878 = vadd.f32 0.0, %v877
      %v879 = vpop.f32.mrb[0].mxu0
      %v880 = vpop.f32.mrb[0].mxu0
      %v881 = vadd.f32 0.0, %v880
      %v882 = vpop.f32.mrb[0].mxu0
      %883 = vmatprep.mubr.bf16.mxu0 0
      %884 = vmatmul.mubr.bf16.gmra.mrb[0].mxu0 %v620
      %v885 = vpop.f32.mrb[0].mxu0
      %v886 = vadd.f32 0.0, %v885
      %v887 = vpop.f32.mrb[0].mxu0
      %v888 = vpop.f32.mrb[0].mxu0
      %v889 = vadd.f32 0.0, %v888
      %v890 = vpop.f32.mrb[0].mxu0
      %891 = vmatprep.mubr.bf16.mxu0 0
      %892 = vmatmul.mubr.bf16.gmra.mrb[0].mxu0 %v621
      %v893 = vpop.f32.mrb[0].mxu0
      %v894 = vadd.f32 0.0, %v893
      %v895 = vpop.f32.mrb[0].mxu0
      %v896 = vpop.f32.mrb[0].mxu0
      %v897 = vadd.f32 0.0, %v896
      %v898 = vpop.f32.mrb[0].mxu0
      %899 = vmatprep.mubr.bf16.mxu0 0
      %900 = vmatmul.mubr.bf16.gmra.mrb[0].mxu0 %v622
      %v901 = vpop.f32.mrb[0].mxu0
      %v902 = vadd.f32 0.0, %v901
      %v903 = vpop.f32.mrb[0].mxu0
      %v904 = vpop.f32.mrb[0].mxu0
      %v905 = vadd.f32 0.0, %v904
      %v906 = vpop.f32.mrb[0].mxu0
      %907 = vmatprep.mubr.bf16.mxu0 0
      %908 = vmatmul.mubr.bf16.gmra.mrb[0].mxu0 %v623
      %v909 = vpop.f32.mrb[0].mxu0
      %v910 = vadd.f32 0.0, %v909
      %v911 = vpop.f32.mrb[0].mxu0
      %v912 = vpop.f32.mrb[0].mxu0
      %v913 = vadd.f32 0.0, %v912
      %v914 = vpop.f32.mrb[0].mxu0
      %915 = vmatprep.mubr.bf16.mxu0 0
      %916 = vmatmul.mubr.bf16.gmra.mrb[0].mxu0 %v624
      %v917 = vpop.f32.mrb[0].mxu0
      %v918 = vadd.f32 0.0, %v917
      %v919 = vpop.f32.mrb[0].mxu0
      %v920 = vpop.f32.mrb[0].mxu0
      %v921 = vadd.f32 0.0, %v920
      %v922 = vpop.f32.mrb[0].mxu0
      %923 = vmatprep.mubr.bf16.mxu0 0
      %924 = vmatmul.mubr.bf16.gmra.mrb[0].mxu0 %v625
      %v925 = vpop.f32.mrb[0].mxu0
      %v926 = vadd.f32 0.0, %v925
      %v927 = vpop.f32.mrb[0].mxu0
      %v928 = vpop.f32.mrb[0].mxu0
      %v929 = vadd.f32 0.0, %v928
      %v930 = vpop.f32.mrb[0].mxu0
      %931 = vmatprep.mubr.bf16.mxu0 0
      %932 = vmatmul.mubr.bf16.gmra.mrb[0].mxu0 %v626
      %v933 = vpop.f32.mrb[0].mxu0
      %v934 = vadd.f32 0.0, %v933
      %v935 = vpop.f32.mrb[0].mxu0
      %v936 = vpop.f32.mrb[0].mxu0
      %v937 = vadd.f32 0.0, %v936
      %v938 = vpop.f32.mrb[0].mxu0
      %939 = vmatprep.mubr.bf16.mxu0 0
      %940 = vmatmul.mubr.bf16.gmra.mrb[0].mxu0 %v627
      %v941 = vpop.f32.mrb[0].mxu0
      %v942 = vadd.f32 0.0, %v941
      %v943 = vpop.f32.mrb[0].mxu0
      %v944 = vpop.f32.mrb[0].mxu0
      %v945 = vadd.f32 0.0, %v944
      %v946 = vpop.f32.mrb[0].mxu0
      %947 = vmatprep.mubr.bf16.mxu0 0
      %948 = vmatmul.mubr.bf16.gmra.mrb[0].mxu0 %v628
      %v949 = vpop.f32.mrb[0].mxu0
      %v950 = vadd.f32 0.0, %v949
      %v951 = vpop.f32.mrb[0].mxu0
      %v952 = vpop.f32.mrb[0].mxu0
      %v953 = vadd.f32 0.0, %v952
      %v954 = vpop.f32.mrb[0].mxu0
      %955 = vmatprep.mubr.bf16.mxu0 0
      %956 = vmatmul.mubr.bf16.gmra.mrb[0].mxu0 %v629
      %v957 = vpop.f32.mrb[0].mxu0
      %v958 = vadd.f32 0.0, %v957
      %v959 = vpop.f32.mrb[0].mxu0
      %v960 = vpop.f32.mrb[0].mxu0
      %v961 = vadd.f32 0.0, %v960
      %v962 = vpop.f32.mrb[0].mxu0
      %963 = vmatprep.mubr.bf16.mxu0 0
      %964 = vmatmul.mubr.bf16.gmra.mrb[0].mxu0 %v630
      %v965 = vpop.f32.mrb[0].mxu0
      %v966 = vadd.f32 0.0, %v965
      %v967 = vpop.f32.mrb[0].mxu0
      %v968 = vpop.f32.mrb[0].mxu0
      %v969 = vadd.f32 0.0, %v968
      %v970 = vpop.f32.mrb[0].mxu0
      %971 = vmatprep.mubr.bf16.mxu0 0
      %972 = vmatmul.mubr.bf16.gmra.mrb[0].mxu0 %v631
      %v973 = vpop.f32.mrb[0].mxu0
      %v974 = vadd.f32 0.0, %v973
      %v975 = vpop.f32.mrb[0].mxu0
      %v976 = vpop.f32.mrb[0].mxu0
      %v977 = vadd.f32 0.0, %v976
      %v978 = vpop.f32.mrb[0].mxu0
      %979 = vmatprep.mubr.bf16.mxu0 0
      %980 = vmatmul.mubr.bf16.gmra.mrb[0].mxu0 %v632
      %v981 = vpop.f32.mrb[0].mxu0
      %v982 = vadd.f32 0.0, %v981
      %v983 = vpop.f32.mrb[0].mxu0
      %v984 = vpop.f32.mrb[0].mxu0
      %v985 = vadd.f32 0.0, %v984
      %v986 = vpop.f32.mrb[0].mxu0
      %987 = vmatprep.mubr.bf16.mxu0 0
      %988 = vmatmul.mubr.bf16.gmra.mrb[0].mxu0 %v633
      %v989 = vpop.f32.mrb[0].mxu0
      %v990 = vadd.f32 0.0, %v989
      %v991 = vpop.f32.mrb[0].mxu0
      %v992 = vpop.f32.mrb[0].mxu0
      %v993 = vadd.f32 0.0, %v992
      %v994 = vpop.f32.mrb[0].mxu0
      %995 = vmatprep.mubr.bf16.mxu0 0
      %996 = vmatmul.mubr.bf16.gmra.mrb[0].mxu0 %v634
      %v997 = vpop.f32.mrb[0].mxu0
      %v998 = vadd.f32 0.0, %v997
      %v999 = vpop.f32.mrb[0].mxu0
      %v1000 = vpop.f32.mrb[0].mxu0
      %v1001 = vadd.f32 0.0, %v1000
      %v1002 = vpop.f32.mrb[0].mxu0
      %1003 = vdwg.mxu0
      %v1004 = vadd.f32 %v331, %v750
      %v1005 = vadd.f32 %v332, %v753
      %v1006 = vadd.f32 %v333, %v758
      %v1007 = vadd.f32 %v334, %v761
      %v1008 = vadd.f32 %v335, %v766
      %v1009 = vadd.f32 %v336, %v769
      %v1010 = vadd.f32 %v337, %v774
      %v1011 = vadd.f32 %v338, %v777
      %v1012 = vadd.f32 %v339, %v782
      %v1013 = vadd.f32 %v340, %v785
      %v1014 = vadd.f32 %v341, %v790
      %v1015 = vadd.f32 %v342, %v793
      %v1016 = vadd.f32 %v343, %v798
      %v1017 = vadd.f32 %v344, %v801
      %v1018 = vadd.f32 %v345, %v806
      %v1019 = vadd.f32 %v346, %v809
      %v1020 = vadd.f32 %v347, %v814
      %v1021 = vadd.f32 %v348, %v817
      %v1022 = vadd.f32 %v349, %v822
      %v1023 = vadd.f32 %v350, %v825
      %v1024 = vadd.f32 %v351, %v830
      %v1025 = vadd.f32 %v352, %v833
      %v1026 = vadd.f32 %v353, %v838
      %v1027 = vadd.f32 %v354, %v841
      %v1028 = vadd.f32 %v355, %v846
      %v1029 = vadd.f32 %v356, %v849
      %v1030 = vadd.f32 %v357, %v854
      %v1031 = vadd.f32 %v358, %v857
      %v1032 = vadd.f32 %v359, %v862
      %v1033 = vadd.f32 %v360, %v865
      %v1034 = vadd.f32 %v361, %v870
      %v1035 = vadd.f32 %v362, %v873
      %v1036 = vadd.f32 %v363, %v878
      %v1037 = vadd.f32 %v364, %v881
      %v1038 = vadd.f32 %v365, %v886
      %v1039 = vadd.f32 %v366, %v889
      %v1040 = vadd.f32 %v367, %v894
      %v1041 = vadd.f32 %v368, %v897
      %v1042 = vadd.f32 %v369, %v902
      %v1043 = vadd.f32 %v370, %v905
      %v1044 = vadd.f32 %v371, %v910
      %v1045 = vadd.f32 %v372, %v913
      %v1046 = vadd.f32 %v373, %v918
      %v1047 = vadd.f32 %v374, %v921
      %v1048 = vadd.f32 %v375, %v926
      %v1049 = vadd.f32 %v376, %v929
      %v1050 = vadd.f32 %v377, %v934
      %v1051 = vadd.f32 %v378, %v937
      %v1052 = vadd.f32 %v379, %v942
      %v1053 = vadd.f32 %v380, %v945
      %v1054 = vadd.f32 %v381, %v950
      %v1055 = vadd.f32 %v382, %v953
      %v1056 = vadd.f32 %v383, %v958
      %v1057 = vadd.f32 %v384, %v961
      %v1058 = vadd.f32 %v385, %v966
      %v1059 = vadd.f32 %v386, %v969
      %v1060 = vadd.f32 %v387, %v974
      %v1061 = vadd.f32 %v388, %v977
      %v1062 = vadd.f32 %v389, %v982
      %v1063 = vadd.f32 %v390, %v985
      %v1064 = vadd.f32 %v391, %v990
      %v1065 = vadd.f32 %v392, %v993
      %v1066 = vadd.f32 %v393, %v998
      %v1067 = vadd.f32 %v394, %v1001
      %1068 = vst [vmem:[#allocation2] sm:$0xff] %v1004
      %1069 = vst [vmem:[#allocation2 + $0x8] sm:$0xff] %v1005
      %1070 = vst [vmem:[#allocation2 + $0x10] sm:$0xff] %v1006
      %1071 = vst [vmem:[#allocation2 + $0x18] sm:$0xff] %v1007
      %1072 = vst [vmem:[#allocation2 + $0x20] sm:$0xff] %v1008
      %1073 = vst [vmem:[#allocation2 + $0x28] sm:$0xff] %v1009
      %1074 = vst [vmem:[#allocation2 + $0x30] sm:$0xff] %v1010
      %1075 = vst [vmem:[#allocation2 + $0x38] sm:$0xff] %v1011
      %1076 = vst [vmem:[#allocation2 + $0x40] sm:$0xff] %v1012
      %1077 = vst [vmem:[#allocation2 + $0x48] sm:$0xff] %v1013
      %1078 = vst [vmem:[#allocation2 + $0x50] sm:$0xff] %v1014
      %1079 = vst [vmem:[#allocation2 + $0x58] sm:$0xff] %v1015
      %1080 = vst [vmem:[#allocation2 + $0x60] sm:$0xff] %v1016
      %1081 = vst [vmem:[#allocation2 + $0x68] sm:$0xff] %v1017
      %1082 = vst [vmem:[#allocation2 + $0x70] sm:$0xff] %v1018
      %1083 = vst [vmem:[#allocation2 + $0x78] sm:$0xff] %v1019
      %1084 = vst [vmem:[#allocation2 + $0x80] sm:$0xff] %v1020
      %1085 = vst [vmem:[#allocation2 + $0x88] sm:$0xff] %v1021
      %1086 = vst [vmem:[#allocation2 + $0x90] sm:$0xff] %v1022
      %1087 = vst [vmem:[#allocation2 + $0x98] sm:$0xff] %v1023
      %1088 = vst [vmem:[#allocation2 + $0xa0] sm:$0xff] %v1024
      %1089 = vst [vmem:[#allocation2 + $0xa8] sm:$0xff] %v1025
      %1090 = vst [vmem:[#allocation2 + $0xb0] sm:$0xff] %v1026
      %1091 = vst [vmem:[#allocation2 + $0xb8] sm:$0xff] %v1027
      %1092 = vst [vmem:[#allocation2 + $0xc0] sm:$0xff] %v1028
      %1093 = vst [vmem:[#allocation2 + $0xc8] sm:$0xff] %v1029
      %1094 = vst [vmem:[#allocation2 + $0xd0] sm:$0xff] %v1030
      %1095 = vst [vmem:[#allocation2 + $0xd8] sm:$0xff] %v1031
      %1096 = vst [vmem:[#allocation2 + $0xe0] sm:$0xff] %v1032
      %1097 = vst [vmem:[#allocation2 + $0xe8] sm:$0xff] %v1033
      %1098 = vst [vmem:[#allocation2 + $0xf0] sm:$0xff] %v1034
      %1099 = vst [vmem:[#allocation2 + $0xf8] sm:$0xff] %v1035
      %1100 = vst [vmem:[#allocation2 + $0x100] sm:$0xff] %v1036
      %1101 = vst [vmem:[#allocation2 + $0x108] sm:$0xff] %v1037
      %1102 = vst [vmem:[#allocation2 + $0x110] sm:$0xff] %v1038
      %1103 = vst [vmem:[#allocation2 + $0x118] sm:$0xff] %v1039
      %1104 = vst [vmem:[#allocation2 + $0x120] sm:$0xff] %v1040
      %1105 = vst [vmem:[#allocation2 + $0x128] sm:$0xff] %v1041
      %1106 = vst [vmem:[#allocation2 + $0x130] sm:$0xff] %v1042
      %1107 = vst [vmem:[#allocation2 + $0x138] sm:$0xff] %v1043
      %1108 = vst [vmem:[#allocation2 + $0x140] sm:$0xff] %v1044
      %1109 = vst [vmem:[#allocation2 + $0x148] sm:$0xff] %v1045
      %1110 = vst [vmem:[#allocation2 + $0x150] sm:$0xff] %v1046
      %1111 = vst [vmem:[#allocation2 + $0x158] sm:$0xff] %v1047
      %1112 = vst [vmem:[#allocation2 + $0x160] sm:$0xff] %v1048
      %1113 = vst [vmem:[#allocation2 + $0x168] sm:$0xff] %v1049
      %1114 = vst [vmem:[#allocation2 + $0x170] sm:$0xff] %v1050
      %1115 = vst [vmem:[#allocation2 + $0x178] sm:$0xff] %v1051
      %1116 = vst [vmem:[#allocation2 + $0x180] sm:$0xff] %v1052
      %1117 = vst [vmem:[#allocation2 + $0x188] sm:$0xff] %v1053
      %1118 = vst [vmem:[#allocation2 + $0x190] sm:$0xff] %v1054
      %1119 = vst [vmem:[#allocation2 + $0x198] sm:$0xff] %v1055
      %1120 = vst [vmem:[#allocation2 + $0x1a0] sm:$0xff] %v1056
      %1121 = vst [vmem:[#allocation2 + $0x1a8] sm:$0xff] %v1057
      %1122 = vst [vmem:[#allocation2 + $0x1b0] sm:$0xff] %v1058
      %1123 = vst [vmem:[#allocation2 + $0x1b8] sm:$0xff] %v1059
      %1124 = vst [vmem:[#allocation2 + $0x1c0] sm:$0xff] %v1060
      %1125 = vst [vmem:[#allocation2 + $0x1c8] sm:$0xff] %v1061
      %1126 = vst [vmem:[#allocation2 + $0x1d0] sm:$0xff] %v1062
      %1127 = vst [vmem:[#allocation2 + $0x1d8] sm:$0xff] %v1063
      %1128 = vst [vmem:[#allocation2 + $0x1e0] sm:$0xff] %v1064
      %1129 = vst [vmem:[#allocation2 + $0x1e8] sm:$0xff] %v1065
      %1130 = vst [vmem:[#allocation2 + $0x1f0] sm:$0xff] %v1066
      %1131 = vst [vmem:[#allocation2 + $0x1f8] sm:$0xff] %v1067
      // Predicated region
      $region37: #{_input_fwd.1} parent=31 // pred_check
        %p1132 = pneg %p263
      $region38: #{_input_fwd.1} parent=31 // pred_check_branch
        %1134 = sbr.rel (%p1132) target = $region40
      $region39: #{_input_fwd.1} parent=31 // pred_region
        %v1135 = vld [vmem:[#allocation2] sm:$0xff]
        %v1136 = vld [vmem:[#allocation2 + $0x8] sm:$0xff]
        %v1137 = vld [vmem:[#allocation2 + $0x10] sm:$0xff]
        %v1138 = vld [vmem:[#allocation2 + $0x18] sm:$0xff]
        %v1139 = vld [vmem:[#allocation2 + $0x20] sm:$0xff]
        %v1140 = vld [vmem:[#allocation2 + $0x28] sm:$0xff]
        %v1141 = vld [vmem:[#allocation2 + $0x30] sm:$0xff]
        %v1142 = vld [vmem:[#allocation2 + $0x38] sm:$0xff]
        %v1143 = vld [vmem:[#allocation2 + $0x40] sm:$0xff]
        %v1144 = vld [vmem:[#allocation2 + $0x48] sm:$0xff]
        %v1145 = vld [vmem:[#allocation2 + $0x50] sm:$0xff]
        %v1146 = vld [vmem:[#allocation2 + $0x58] sm:$0xff]
        %v1147 = vld [vmem:[#allocation2 + $0x60] sm:$0xff]
        %v1148 = vld [vmem:[#allocation2 + $0x68] sm:$0xff]
        %v1149 = vld [vmem:[#allocation2 + $0x70] sm:$0xff]
        %v1150 = vld [vmem:[#allocation2 + $0x78] sm:$0xff]
        %v1151 = vld [vmem:[#allocation2 + $0x80] sm:$0xff]
        %v1152 = vld [vmem:[#allocation2 + $0x88] sm:$0xff]
        %v1153 = vld [vmem:[#allocation2 + $0x90] sm:$0xff]
        %v1154 = vld [vmem:[#allocation2 + $0x98] sm:$0xff]
        %v1155 = vld [vmem:[#allocation2 + $0xa0] sm:$0xff]
        %v1156 = vld [vmem:[#allocation2 + $0xa8] sm:$0xff]
        %v1157 = vld [vmem:[#allocation2 + $0xb0] sm:$0xff]
        %v1158 = vld [vmem:[#allocation2 + $0xb8] sm:$0xff]
        %v1159 = vld [vmem:[#allocation2 + $0xc0] sm:$0xff]
        %v1160 = vld [vmem:[#allocation2 + $0xc8] sm:$0xff]
        %v1161 = vld [vmem:[#allocation2 + $0xd0] sm:$0xff]
        %v1162 = vld [vmem:[#allocation2 + $0xd8] sm:$0xff]
        %v1163 = vld [vmem:[#allocation2 + $0xe0] sm:$0xff]
        %v1164 = vld [vmem:[#allocation2 + $0xe8] sm:$0xff]
        %v1165 = vld [vmem:[#allocation2 + $0xf0] sm:$0xff]
        %v1166 = vld [vmem:[#allocation2 + $0xf8] sm:$0xff]
        %v1167 = vld [vmem:[#allocation2 + $0x100] sm:$0xff]
        %v1168 = vld [vmem:[#allocation2 + $0x108] sm:$0xff]
        %v1169 = vld [vmem:[#allocation2 + $0x110] sm:$0xff]
        %v1170 = vld [vmem:[#allocation2 + $0x118] sm:$0xff]
        %v1171 = vld [vmem:[#allocation2 + $0x120] sm:$0xff]
        %v1172 = vld [vmem:[#allocation2 + $0x128] sm:$0xff]
        %v1173 = vld [vmem:[#allocation2 + $0x130] sm:$0xff]
        %v1174 = vld [vmem:[#allocation2 + $0x138] sm:$0xff]
        %v1175 = vld [vmem:[#allocation2 + $0x140] sm:$0xff]
        %v1176 = vld [vmem:[#allocation2 + $0x148] sm:$0xff]
        %v1177 = vld [vmem:[#allocation2 + $0x150] sm:$0xff]
        %v1178 = vld [vmem:[#allocation2 + $0x158] sm:$0xff]
        %v1179 = vld [vmem:[#allocation2 + $0x160] sm:$0xff]
        %v1180 = vld [vmem:[#allocation2 + $0x168] sm:$0xff]
        %v1181 = vld [vmem:[#allocation2 + $0x170] sm:$0xff]
        %v1182 = vld [vmem:[#allocation2 + $0x178] sm:$0xff]
        %v1183 = vld [vmem:[#allocation2 + $0x180] sm:$0xff]
        %v1184 = vld [vmem:[#allocation2 + $0x188] sm:$0xff]
        %v1185 = vld [vmem:[#allocation2 + $0x190] sm:$0xff]
        %v1186 = vld [vmem:[#allocation2 + $0x198] sm:$0xff]
        %v1187 = vld [vmem:[#allocation2 + $0x1a0] sm:$0xff]
        %v1188 = vld [vmem:[#allocation2 + $0x1a8] sm:$0xff]
        %v1189 = vld [vmem:[#allocation2 + $0x1b0] sm:$0xff]
        %v1190 = vld [vmem:[#allocation2 + $0x1b8] sm:$0xff]
        %v1191 = vld [vmem:[#allocation2 + $0x1c0] sm:$0xff]
        %v1192 = vld [vmem:[#allocation2 + $0x1c8] sm:$0xff]
        %v1193 = vld [vmem:[#allocation2 + $0x1d0] sm:$0xff]
        %v1194 = vld [vmem:[#allocation2 + $0x1d8] sm:$0xff]
        %v1195 = vld [vmem:[#allocation2 + $0x1e0] sm:$0xff]
        %v1196 = vld [vmem:[#allocation2 + $0x1e8] sm:$0xff]
        %v1197 = vld [vmem:[#allocation2 + $0x1f0] sm:$0xff]
        %v1198 = vld [vmem:[#allocation2 + $0x1f8] sm:$0xff]
        %v1199 = vld [vmem:[%s252] sm:$0x1]
        %v1200 = vlaneseq
        %v1201 = vshrl.u32 %v1200, 7
        %v1202 = vsub.s32 0, %v1201
        %v1203 = vrot.slane %v1199, %v1202
        %v1204 = vmul.f32 %v1135, %v1203
        %v1205 = vmul.f32 %v1136, %v1203
        %v1206 = vmul.f32 %v1137, %v1203
        %v1207 = vmul.f32 %v1138, %v1203
        %v1208 = vmul.f32 %v1139, %v1203
        %v1209 = vmul.f32 %v1140, %v1203
        %v1210 = vmul.f32 %v1141, %v1203
        %v1211 = vmul.f32 %v1142, %v1203
        %v1212 = vmul.f32 %v1143, %v1203
        %v1213 = vmul.f32 %v1144, %v1203
        %v1214 = vmul.f32 %v1145, %v1203
        %v1215 = vmul.f32 %v1146, %v1203
        %v1216 = vmul.f32 %v1147, %v1203
        %v1217 = vmul.f32 %v1148, %v1203
        %v1218 = vmul.f32 %v1149, %v1203
        %v1219 = vmul.f32 %v1150, %v1203
        %v1220 = vmul.f32 %v1151, %v1203
        %v1221 = vmul.f32 %v1152, %v1203
        %v1222 = vmul.f32 %v1153, %v1203
        %v1223 = vmul.f32 %v1154, %v1203
        %v1224 = vmul.f32 %v1155, %v1203
        %v1225 = vmul.f32 %v1156, %v1203
        %v1226 = vmul.f32 %v1157, %v1203
        %v1227 = vmul.f32 %v1158, %v1203
        %v1228 = vmul.f32 %v1159, %v1203
        %v1229 = vmul.f32 %v1160, %v1203
        %v1230 = vmul.f32 %v1161, %v1203
        %v1231 = vmul.f32 %v1162, %v1203
        %v1232 = vmul.f32 %v1163, %v1203
        %v1233 = vmul.f32 %v1164, %v1203
        %v1234 = vmul.f32 %v1165, %v1203
        %v1235 = vmul.f32 %v1166, %v1203
        %v1236 = vmul.f32 %v1167, %v1203
        %v1237 = vmul.f32 %v1168, %v1203
        %v1238 = vmul.f32 %v1169, %v1203
        %v1239 = vmul.f32 %v1170, %v1203
        %v1240 = vmul.f32 %v1171, %v1203
        %v1241 = vmul.f32 %v1172, %v1203
        %v1242 = vmul.f32 %v1173, %v1203
        %v1243 = vmul.f32 %v1174, %v1203
        %v1244 = vmul.f32 %v1175, %v1203
        %v1245 = vmul.f32 %v1176, %v1203
        %v1246 = vmul.f32 %v1177, %v1203
        %v1247 = vmul.f32 %v1178, %v1203
        %v1248 = vmul.f32 %v1179, %v1203
        %v1249 = vmul.f32 %v1180, %v1203
        %v1250 = vmul.f32 %v1181, %v1203
        %v1251 = vmul.f32 %v1182, %v1203
        %v1252 = vmul.f32 %v1183, %v1203
        %v1253 = vmul.f32 %v1184, %v1203
        %v1254 = vmul.f32 %v1185, %v1203
        %v1255 = vmul.f32 %v1186, %v1203
        %v1256 = vmul.f32 %v1187, %v1203
        %v1257 = vmul.f32 %v1188, %v1203
        %v1258 = vmul.f32 %v1189, %v1203
        %v1259 = vmul.f32 %v1190, %v1203
        %v1260 = vmul.f32 %v1191, %v1203
        %v1261 = vmul.f32 %v1192, %v1203
        %v1262 = vmul.f32 %v1193, %v1203
        %v1263 = vmul.f32 %v1194, %v1203
        %v1264 = vmul.f32 %v1195, %v1203
        %v1265 = vmul.f32 %v1196, %v1203
        %v1266 = vmul.f32 %v1197, %v1203
        %v1267 = vmul.f32 %v1198, %v1203
        %v1268 = vld [vmem:[%s252 + $0x1] sm:$0x1]
        %v1269 = vlaneseq
        %v1270 = vshrl.u32 %v1269, 7
        %v1271 = vsub.s32 0, %v1270
        %v1272 = vrot.slane %v1268, %v1271
        %v1273 = vadd.f32 %v1204, %v1272
        %v1274 = vadd.f32 %v1205, %v1272
        %v1275 = vadd.f32 %v1206, %v1272
        %v1276 = vadd.f32 %v1207, %v1272
        %v1277 = vadd.f32 %v1208, %v1272
        %v1278 = vadd.f32 %v1209, %v1272
        %v1279 = vadd.f32 %v1210, %v1272
        %v1280 = vadd.f32 %v1211, %v1272
        %v1281 = vadd.f32 %v1212, %v1272
        %v1282 = vadd.f32 %v1213, %v1272
        %v1283 = vadd.f32 %v1214, %v1272
        %v1284 = vadd.f32 %v1215, %v1272
        %v1285 = vadd.f32 %v1216, %v1272
        %v1286 = vadd.f32 %v1217, %v1272
        %v1287 = vadd.f32 %v1218, %v1272
        %v1288 = vadd.f32 %v1219, %v1272
        %v1289 = vadd.f32 %v1220, %v1272
        %v1290 = vadd.f32 %v1221, %v1272
        %v1291 = vadd.f32 %v1222, %v1272
        %v1292 = vadd.f32 %v1223, %v1272
        %v1293 = vadd.f32 %v1224, %v1272
        %v1294 = vadd.f32 %v1225, %v1272
        %v1295 = vadd.f32 %v1226, %v1272
        %v1296 = vadd.f32 %v1227, %v1272
        %v1297 = vadd.f32 %v1228, %v1272
        %v1298 = vadd.f32 %v1229, %v1272
        %v1299 = vadd.f32 %v1230, %v1272
        %v1300 = vadd.f32 %v1231, %v1272
        %v1301 = vadd.f32 %v1232, %v1272
        %v1302 = vadd.f32 %v1233, %v1272
        %v1303 = vadd.f32 %v1234, %v1272
        %v1304 = vadd.f32 %v1235, %v1272
        %v1305 = vadd.f32 %v1236, %v1272
        %v1306 = vadd.f32 %v1237, %v1272
        %v1307 = vadd.f32 %v1238, %v1272
        %v1308 = vadd.f32 %v1239, %v1272
        %v1309 = vadd.f32 %v1240, %v1272
        %v1310 = vadd.f32 %v1241, %v1272
        %v1311 = vadd.f32 %v1242, %v1272
        %v1312 = vadd.f32 %v1243, %v1272
        %v1313 = vadd.f32 %v1244, %v1272
        %v1314 = vadd.f32 %v1245, %v1272
        %v1315 = vadd.f32 %v1246, %v1272
        %v1316 = vadd.f32 %v1247, %v1272
        %v1317 = vadd.f32 %v1248, %v1272
        %v1318 = vadd.f32 %v1249, %v1272
        %v1319 = vadd.f32 %v1250, %v1272
        %v1320 = vadd.f32 %v1251, %v1272
        %v1321 = vadd.f32 %v1252, %v1272
        %v1322 = vadd.f32 %v1253, %v1272
        %v1323 = vadd.f32 %v1254, %v1272
        %v1324 = vadd.f32 %v1255, %v1272
        %v1325 = vadd.f32 %v1256, %v1272
        %v1326 = vadd.f32 %v1257, %v1272
        %v1327 = vadd.f32 %v1258, %v1272
        %v1328 = vadd.f32 %v1259, %v1272
        %v1329 = vadd.f32 %v1260, %v1272
        %v1330 = vadd.f32 %v1261, %v1272
        %v1331 = vadd.f32 %v1262, %v1272
        %v1332 = vadd.f32 %v1263, %v1272
        %v1333 = vadd.f32 %v1264, %v1272
        %v1334 = vadd.f32 %v1265, %v1272
        %v1335 = vadd.f32 %v1266, %v1272
        %v1336 = vadd.f32 %v1267, %v1272
        %vm1337 = vcmp.ge.f32.partialorder %v1273, 0.0
        %vm1338 = vcmp.ge.f32.partialorder %v1274, 0.0
        %vm1339 = vcmp.ge.f32.partialorder %v1275, 0.0
        %vm1340 = vcmp.ge.f32.partialorder %v1276, 0.0
        %vm1341 = vcmp.ge.f32.partialorder %v1277, 0.0
        %vm1342 = vcmp.ge.f32.partialorder %v1278, 0.0
        %vm1343 = vcmp.ge.f32.partialorder %v1279, 0.0
        %vm1344 = vcmp.ge.f32.partialorder %v1280, 0.0
        %vm1345 = vcmp.ge.f32.partialorder %v1281, 0.0
        %vm1346 = vcmp.ge.f32.partialorder %v1282, 0.0
        %vm1347 = vcmp.ge.f32.partialorder %v1283, 0.0
        %vm1348 = vcmp.ge.f32.partialorder %v1284, 0.0
        %vm1349 = vcmp.ge.f32.partialorder %v1285, 0.0
        %vm1350 = vcmp.ge.f32.partialorder %v1286, 0.0
        %vm1351 = vcmp.ge.f32.partialorder %v1287, 0.0
        %vm1352 = vcmp.ge.f32.partialorder %v1288, 0.0
        %vm1353 = vcmp.ge.f32.partialorder %v1289, 0.0
        %vm1354 = vcmp.ge.f32.partialorder %v1290, 0.0
        %vm1355 = vcmp.ge.f32.partialorder %v1291, 0.0
        %vm1356 = vcmp.ge.f32.partialorder %v1292, 0.0
        %vm1357 = vcmp.ge.f32.partialorder %v1293, 0.0
        %vm1358 = vcmp.ge.f32.partialorder %v1294, 0.0
        %vm1359 = vcmp.ge.f32.partialorder %v1295, 0.0
        %vm1360 = vcmp.ge.f32.partialorder %v1296, 0.0
        %vm1361 = vcmp.ge.f32.partialorder %v1297, 0.0
        %vm1362 = vcmp.ge.f32.partialorder %v1298, 0.0
        %vm1363 = vcmp.ge.f32.partialorder %v1299, 0.0
        %vm1364 = vcmp.ge.f32.partialorder %v1300, 0.0
        %vm1365 = vcmp.ge.f32.partialorder %v1301, 0.0
        %vm1366 = vcmp.ge.f32.partialorder %v1302, 0.0
        %vm1367 = vcmp.ge.f32.partialorder %v1303, 0.0
        %vm1368 = vcmp.ge.f32.partialorder %v1304, 0.0
        %vm1369 = vcmp.ge.f32.partialorder %v1305, 0.0
        %vm1370 = vcmp.ge.f32.partialorder %v1306, 0.0
        %vm1371 = vcmp.ge.f32.partialorder %v1307, 0.0
        %vm1372 = vcmp.ge.f32.partialorder %v1308, 0.0
        %vm1373 = vcmp.ge.f32.partialorder %v1309, 0.0
        %vm1374 = vcmp.ge.f32.partialorder %v1310, 0.0
        %vm1375 = vcmp.ge.f32.partialorder %v1311, 0.0
        %vm1376 = vcmp.ge.f32.partialorder %v1312, 0.0
        %vm1377 = vcmp.ge.f32.partialorder %v1313, 0.0
        %vm1378 = vcmp.ge.f32.partialorder %v1314, 0.0
        %vm1379 = vcmp.ge.f32.partialorder %v1315, 0.0
        %vm1380 = vcmp.ge.f32.partialorder %v1316, 0.0
        %vm1381 = vcmp.ge.f32.partialorder %v1317, 0.0
        %vm1382 = vcmp.ge.f32.partialorder %v1318, 0.0
        %vm1383 = vcmp.ge.f32.partialorder %v1319, 0.0
        %vm1384 = vcmp.ge.f32.partialorder %v1320, 0.0
        %vm1385 = vcmp.ge.f32.partialorder %v1321, 0.0
        %vm1386 = vcmp.ge.f32.partialorder %v1322, 0.0
        %vm1387 = vcmp.ge.f32.partialorder %v1323, 0.0
        %vm1388 = vcmp.ge.f32.partialorder %v1324, 0.0
        %vm1389 = vcmp.ge.f32.partialorder %v1325, 0.0
        %vm1390 = vcmp.ge.f32.partialorder %v1326, 0.0
        %vm1391 = vcmp.ge.f32.partialorder %v1327, 0.0
        %vm1392 = vcmp.ge.f32.partialorder %v1328, 0.0
        %vm1393 = vcmp.ge.f32.partialorder %v1329, 0.0
        %vm1394 = vcmp.ge.f32.partialorder %v1330, 0.0
        %vm1395 = vcmp.ge.f32.partialorder %v1331, 0.0
        %vm1396 = vcmp.ge.f32.partialorder %v1332, 0.0
        %vm1397 = vcmp.ge.f32.partialorder %v1333, 0.0
        %vm1398 = vcmp.ge.f32.partialorder %v1334, 0.0
        %vm1399 = vcmp.ge.f32.partialorder %v1335, 0.0
        %vm1400 = vcmp.ge.f32.partialorder %v1336, 0.0
        %v1401 = vld [vmem:[%s252 + $0x2] sm:$0x1]
        %v1402 = vlaneseq
        %v1403 = vshrl.u32 %v1402, 7
        %v1404 = vsub.s32 0, %v1403
        %v1405 = vrot.slane %v1401, %v1404
        %v1406 = vmul.f32 %v1273, %v1405
        %v1407 = vmul.f32 %v1274, %v1405
        %v1408 = vmul.f32 %v1275, %v1405
        %v1409 = vmul.f32 %v1276, %v1405
        %v1410 = vmul.f32 %v1277, %v1405
        %v1411 = vmul.f32 %v1278, %v1405
        %v1412 = vmul.f32 %v1279, %v1405
        %v1413 = vmul.f32 %v1280, %v1405
        %v1414 = vmul.f32 %v1281, %v1405
        %v1415 = vmul.f32 %v1282, %v1405
        %v1416 = vmul.f32 %v1283, %v1405
        %v1417 = vmul.f32 %v1284, %v1405
        %v1418 = vmul.f32 %v1285, %v1405
        %v1419 = vmul.f32 %v1286, %v1405
        %v1420 = vmul.f32 %v1287, %v1405
        %v1421 = vmul.f32 %v1288, %v1405
        %v1422 = vmul.f32 %v1289, %v1405
        %v1423 = vmul.f32 %v1290, %v1405
        %v1424 = vmul.f32 %v1291, %v1405
        %v1425 = vmul.f32 %v1292, %v1405
        %v1426 = vmul.f32 %v1293, %v1405
        %v1427 = vmul.f32 %v1294, %v1405
        %v1428 = vmul.f32 %v1295, %v1405
        %v1429 = vmul.f32 %v1296, %v1405
        %v1430 = vmul.f32 %v1297, %v1405
        %v1431 = vmul.f32 %v1298, %v1405
        %v1432 = vmul.f32 %v1299, %v1405
        %v1433 = vmul.f32 %v1300, %v1405
        %v1434 = vmul.f32 %v1301, %v1405
        %v1435 = vmul.f32 %v1302, %v1405
        %v1436 = vmul.f32 %v1303, %v1405
        %v1437 = vmul.f32 %v1304, %v1405
        %v1438 = vmul.f32 %v1305, %v1405
        %v1439 = vmul.f32 %v1306, %v1405
        %v1440 = vmul.f32 %v1307, %v1405
        %v1441 = vmul.f32 %v1308, %v1405
        %v1442 = vmul.f32 %v1309, %v1405
        %v1443 = vmul.f32 %v1310, %v1405
        %v1444 = vmul.f32 %v1311, %v1405
        %v1445 = vmul.f32 %v1312, %v1405
        %v1446 = vmul.f32 %v1313, %v1405
        %v1447 = vmul.f32 %v1314, %v1405
        %v1448 = vmul.f32 %v1315, %v1405
        %v1449 = vmul.f32 %v1316, %v1405
        %v1450 = vmul.f32 %v1317, %v1405
        %v1451 = vmul.f32 %v1318, %v1405
        %v1452 = vmul.f32 %v1319, %v1405
        %v1453 = vmul.f32 %v1320, %v1405
        %v1454 = vmul.f32 %v1321, %v1405
        %v1455 = vmul.f32 %v1322, %v1405
        %v1456 = vmul.f32 %v1323, %v1405
        %v1457 = vmul.f32 %v1324, %v1405
        %v1458 = vmul.f32 %v1325, %v1405
        %v1459 = vmul.f32 %v1326, %v1405
        %v1460 = vmul.f32 %v1327, %v1405
        %v1461 = vmul.f32 %v1328, %v1405
        %v1462 = vmul.f32 %v1329, %v1405
        %v1463 = vmul.f32 %v1330, %v1405
        %v1464 = vmul.f32 %v1331, %v1405
        %v1465 = vmul.f32 %v1332, %v1405
        %v1466 = vmul.f32 %v1333, %v1405
        %v1467 = vmul.f32 %v1334, %v1405
        %v1468 = vmul.f32 %v1335, %v1405
        %v1469 = vmul.f32 %v1336, %v1405
        %v1470 = vsel %vm1337, %v1273, %v1406
        %v1471 = vsel %vm1338, %v1274, %v1407
        %v1472 = vsel %vm1339, %v1275, %v1408
        %v1473 = vsel %vm1340, %v1276, %v1409
        %v1474 = vsel %vm1341, %v1277, %v1410
        %v1475 = vsel %vm1342, %v1278, %v1411
        %v1476 = vsel %vm1343, %v1279, %v1412
        %v1477 = vsel %vm1344, %v1280, %v1413
        %v1478 = vsel %vm1345, %v1281, %v1414
        %v1479 = vsel %vm1346, %v1282, %v1415
        %v1480 = vsel %vm1347, %v1283, %v1416
        %v1481 = vsel %vm1348, %v1284, %v1417
        %v1482 = vsel %vm1349, %v1285, %v1418
        %v1483 = vsel %vm1350, %v1286, %v1419
        %v1484 = vsel %vm1351, %v1287, %v1420
        %v1485 = vsel %vm1352, %v1288, %v1421
        %v1486 = vsel %vm1353, %v1289, %v1422
        %v1487 = vsel %vm1354, %v1290, %v1423
        %v1488 = vsel %vm1355, %v1291, %v1424
        %v1489 = vsel %vm1356, %v1292, %v1425
        %v1490 = vsel %vm1357, %v1293, %v1426
        %v1491 = vsel %vm1358, %v1294, %v1427
        %v1492 = vsel %vm1359, %v1295, %v1428
        %v1493 = vsel %vm1360, %v1296, %v1429
        %v1494 = vsel %vm1361, %v1297, %v1430
        %v1495 = vsel %vm1362, %v1298, %v1431
        %v1496 = vsel %vm1363, %v1299, %v1432
        %v1497 = vsel %vm1364, %v1300, %v1433
        %v1498 = vsel %vm1365, %v1301, %v1434
        %v1499 = vsel %vm1366, %v1302, %v1435
        %v1500 = vsel %vm1367, %v1303, %v1436
        %v1501 = vsel %vm1368, %v1304, %v1437
        %v1502 = vsel %vm1369, %v1305, %v1438
        %v1503 = vsel %vm1370, %v1306, %v1439
        %v1504 = vsel %vm1371, %v1307, %v1440
        %v1505 = vsel %vm1372, %v1308, %v1441
        %v1506 = vsel %vm1373, %v1309, %v1442
        %v1507 = vsel %vm1374, %v1310, %v1443
        %v1508 = vsel %vm1375, %v1311, %v1444
        %v1509 = vsel %vm1376, %v1312, %v1445
        %v1510 = vsel %vm1377, %v1313, %v1446
        %v1511 = vsel %vm1378, %v1314, %v1447
        %v1512 = vsel %vm1379, %v1315, %v1448
        %v1513 = vsel %vm1380, %v1316, %v1449
        %v1514 = vsel %vm1381, %v1317, %v1450
        %v1515 = vsel %vm1382, %v1318, %v1451
        %v1516 = vsel %vm1383, %v1319, %v1452
        %v1517 = vsel %vm1384, %v1320, %v1453
        %v1518 = vsel %vm1385, %v1321, %v1454
        %v1519 = vsel %vm1386, %v1322, %v1455
        %v1520 = vsel %vm1387, %v1323, %v1456
        %v1521 = vsel %vm1388, %v1324, %v1457
        %v1522 = vsel %vm1389, %v1325, %v1458
        %v1523 = vsel %vm1390, %v1326, %v1459
        %v1524 = vsel %vm1391, %v1327, %v1460
        %v1525 = vsel %vm1392, %v1328, %v1461
        %v1526 = vsel %vm1393, %v1329, %v1462
        %v1527 = vsel %vm1394, %v1330, %v1463
        %v1528 = vsel %vm1395, %v1331, %v1464
        %v1529 = vsel %vm1396, %v1332, %v1465
        %v1530 = vsel %vm1397, %v1333, %v1466
        %v1531 = vsel %vm1398, %v1334, %v1467
        %v1532 = vsel %vm1399, %v1335, %v1468
        %v1533 = vsel %vm1400, %v1336, %v1469
        %v1534 = vpack.c.bf16 %v1471, %v1470
        %v1535 = vpack.c.bf16 %v1473, %v1472
        %v1536 = vpack.c.bf16 %v1475, %v1474
        %v1537 = vpack.c.bf16 %v1477, %v1476
        %v1538 = vpack.c.bf16 %v1479, %v1478
        %v1539 = vpack.c.bf16 %v1481, %v1480
        %v1540 = vpack.c.bf16 %v1483, %v1482
        %v1541 = vpack.c.bf16 %v1485, %v1484
        %v1542 = vpack.c.bf16 %v1487, %v1486
        %v1543 = vpack.c.bf16 %v1489, %v1488
        %v1544 = vpack.c.bf16 %v1491, %v1490
        %v1545 = vpack.c.bf16 %v1493, %v1492
        %v1546 = vpack.c.bf16 %v1495, %v1494
        %v1547 = vpack.c.bf16 %v1497, %v1496
        %v1548 = vpack.c.bf16 %v1499, %v1498
        %v1549 = vpack.c.bf16 %v1501, %v1500
        %v1550 = vpack.c.bf16 %v1503, %v1502
        %v1551 = vpack.c.bf16 %v1505, %v1504
        %v1552 = vpack.c.bf16 %v1507, %v1506
        %v1553 = vpack.c.bf16 %v1509, %v1508
        %v1554 = vpack.c.bf16 %v1511, %v1510
        %v1555 = vpack.c.bf16 %v1513, %v1512
        %v1556 = vpack.c.bf16 %v1515, %v1514
        %v1557 = vpack.c.bf16 %v1517, %v1516
        %v1558 = vpack.c.bf16 %v1519, %v1518
        %v1559 = vpack.c.bf16 %v1521, %v1520
        %v1560 = vpack.c.bf16 %v1523, %v1522
        %v1561 = vpack.c.bf16 %v1525, %v1524
        %v1562 = vpack.c.bf16 %v1527, %v1526
        %v1563 = vpack.c.bf16 %v1529, %v1528
        %v1564 = vpack.c.bf16 %v1531, %v1530
        %v1565 = vpack.c.bf16 %v1533, %v1532
        %v1598 = vunpack.c.l.b16 %v1534
        %v1599 = vunpack.c.h.b16 %v1534
        %v1600 = vunpack.c.l.b16 %v1535
        %v1601 = vunpack.c.h.b16 %v1535
        %v1602 = vunpack.c.l.b16 %v1536
        %v1603 = vunpack.c.h.b16 %v1536
        %v1604 = vunpack.c.l.b16 %v1537
        %v1605 = vunpack.c.h.b16 %v1537
        %v1606 = vunpack.c.l.b16 %v1538
        %v1607 = vunpack.c.h.b16 %v1538
        %v1608 = vunpack.c.l.b16 %v1539
        %v1609 = vunpack.c.h.b16 %v1539
        %v1610 = vunpack.c.l.b16 %v1540
        %v1611 = vunpack.c.h.b16 %v1540
        %v1612 = vunpack.c.l.b16 %v1541
        %v1613 = vunpack.c.h.b16 %v1541
        %v1614 = vunpack.c.l.b16 %v1542
        %v1615 = vunpack.c.h.b16 %v1542
        %v1616 = vunpack.c.l.b16 %v1543
        %v1617 = vunpack.c.h.b16 %v1543
        %v1618 = vunpack.c.l.b16 %v1544
        %v1619 = vunpack.c.h.b16 %v1544
        %v1620 = vunpack.c.l.b16 %v1545
        %v1621 = vunpack.c.h.b16 %v1545
        %v1622 = vunpack.c.l.b16 %v1546
        %v1623 = vunpack.c.h.b16 %v1546
        %v1624 = vunpack.c.l.b16 %v1547
        %v1625 = vunpack.c.h.b16 %v1547
        %v1626 = vunpack.c.l.b16 %v1548
        %v1627 = vunpack.c.h.b16 %v1548
        %v1628 = vunpack.c.l.b16 %v1549
        %v1629 = vunpack.c.h.b16 %v1549
        %v1630 = vunpack.c.l.b16 %v1550
        %v1631 = vunpack.c.h.b16 %v1550
        %v1632 = vunpack.c.l.b16 %v1551
        %v1633 = vunpack.c.h.b16 %v1551
        %v1634 = vunpack.c.l.b16 %v1552
        %v1635 = vunpack.c.h.b16 %v1552
        %v1636 = vunpack.c.l.b16 %v1553
        %v1637 = vunpack.c.h.b16 %v1553
        %v1638 = vunpack.c.l.b16 %v1554
        %v1639 = vunpack.c.h.b16 %v1554
        %v1640 = vunpack.c.l.b16 %v1555
        %v1641 = vunpack.c.h.b16 %v1555
        %v1642 = vunpack.c.l.b16 %v1556
        %v1643 = vunpack.c.h.b16 %v1556
        %v1644 = vunpack.c.l.b16 %v1557
        %v1645 = vunpack.c.h.b16 %v1557
        %v1646 = vunpack.c.l.b16 %v1558
        %v1647 = vunpack.c.h.b16 %v1558
        %v1648 = vunpack.c.l.b16 %v1559
        %v1649 = vunpack.c.h.b16 %v1559
        %v1650 = vunpack.c.l.b16 %v1560
        %v1651 = vunpack.c.h.b16 %v1560
        %v1652 = vunpack.c.l.b16 %v1561
        %v1653 = vunpack.c.h.b16 %v1561
        %v1654 = vunpack.c.l.b16 %v1562
        %v1655 = vunpack.c.h.b16 %v1562
        %v1656 = vunpack.c.l.b16 %v1563
        %v1657 = vunpack.c.h.b16 %v1563
        %v1658 = vunpack.c.l.b16 %v1564
        %v1659 = vunpack.c.h.b16 %v1564
        %v1660 = vunpack.c.l.b16 %v1565
        %v1661 = vunpack.c.h.b16 %v1565
        %v1662 = vpack.c.b16 %v1598, %v1598
        %v1663 = vpack.c.b16 %v1599, %v1599
        %v1664 = vpack.c.b16 %v1600, %v1600
        %v1665 = vpack.c.b16 %v1601, %v1601
        %v1666 = vpack.c.b16 %v1602, %v1602
        %v1667 = vpack.c.b16 %v1603, %v1603
        %v1668 = vpack.c.b16 %v1604, %v1604
        %v1669 = vpack.c.b16 %v1605, %v1605
        %v1670 = vpack.c.b16 %v1606, %v1606
        %v1671 = vpack.c.b16 %v1607, %v1607
        %v1672 = vpack.c.b16 %v1608, %v1608
        %v1673 = vpack.c.b16 %v1609, %v1609
        %v1674 = vpack.c.b16 %v1610, %v1610
        %v1675 = vpack.c.b16 %v1611, %v1611
        %v1676 = vpack.c.b16 %v1612, %v1612
        %v1677 = vpack.c.b16 %v1613, %v1613
        %v1678 = vpack.c.b16 %v1614, %v1614
        %v1679 = vpack.c.b16 %v1615, %v1615
        %v1680 = vpack.c.b16 %v1616, %v1616
        %v1681 = vpack.c.b16 %v1617, %v1617
        %v1682 = vpack.c.b16 %v1618, %v1618
        %v1683 = vpack.c.b16 %v1619, %v1619
        %v1684 = vpack.c.b16 %v1620, %v1620
        %v1685 = vpack.c.b16 %v1621, %v1621
        %v1686 = vpack.c.b16 %v1622, %v1622
        %v1687 = vpack.c.b16 %v1623, %v1623
        %v1688 = vpack.c.b16 %v1624, %v1624
        %v1689 = vpack.c.b16 %v1625, %v1625
        %v1690 = vpack.c.b16 %v1626, %v1626
        %v1691 = vpack.c.b16 %v1627, %v1627
        %v1692 = vpack.c.b16 %v1628, %v1628
        %v1693 = vpack.c.b16 %v1629, %v1629
        %v1694 = vpack.c.b16 %v1630, %v1630
        %v1695 = vpack.c.b16 %v1631, %v1631
        %v1696 = vpack.c.b16 %v1632, %v1632
        %v1697 = vpack.c.b16 %v1633, %v1633
        %v1698 = vpack.c.b16 %v1634, %v1634
        %v1699 = vpack.c.b16 %v1635, %v1635
        %v1700 = vpack.c.b16 %v1636, %v1636
        %v1701 = vpack.c.b16 %v1637, %v1637
        %v1702 = vpack.c.b16 %v1638, %v1638
        %v1703 = vpack.c.b16 %v1639, %v1639
        %v1704 = vpack.c.b16 %v1640, %v1640
        %v1705 = vpack.c.b16 %v1641, %v1641
        %v1706 = vpack.c.b16 %v1642, %v1642
        %v1707 = vpack.c.b16 %v1643, %v1643
        %v1708 = vpack.c.b16 %v1644, %v1644
        %v1709 = vpack.c.b16 %v1645, %v1645
        %v1710 = vpack.c.b16 %v1646, %v1646
        %v1711 = vpack.c.b16 %v1647, %v1647
        %v1712 = vpack.c.b16 %v1648, %v1648
        %v1713 = vpack.c.b16 %v1649, %v1649
        %v1714 = vpack.c.b16 %v1650, %v1650
        %v1715 = vpack.c.b16 %v1651, %v1651
        %v1716 = vpack.c.b16 %v1652, %v1652
        %v1717 = vpack.c.b16 %v1653, %v1653
        %v1718 = vpack.c.b16 %v1654, %v1654
        %v1719 = vpack.c.b16 %v1655, %v1655
        %v1720 = vpack.c.b16 %v1656, %v1656
        %v1721 = vpack.c.b16 %v1657, %v1657
        %v1722 = vpack.c.b16 %v1658, %v1658
        %v1723 = vpack.c.b16 %v1659, %v1659
        %v1724 = vpack.c.b16 %v1660, %v1660
        %v1725 = vpack.c.b16 %v1661, %v1661
        %1790 = vst [vmem:[%s260] sm:$0xf] %v1662
        %1791 = vst [vmem:[%s260 + $0x4] sm:$0xf] %v1663
        %1792 = vst [vmem:[%s260 + $0x8] sm:$0xf] %v1664
        %1793 = vst [vmem:[%s260 + $0xc] sm:$0xf] %v1665
        %1794 = vst [vmem:[%s260 + $0x10] sm:$0xf] %v1666
        %1795 = vst [vmem:[%s260 + $0x14] sm:$0xf] %v1667
        %1796 = vst [vmem:[%s260 + $0x18] sm:$0xf] %v1668
        %1797 = vst [vmem:[%s260 + $0x1c] sm:$0xf] %v1669
        %1798 = vst [vmem:[%s260 + $0x20] sm:$0xf] %v1670
        %1799 = vst [vmem:[%s260 + $0x24] sm:$0xf] %v1671
        %1800 = vst [vmem:[%s260 + $0x28] sm:$0xf] %v1672
        %1801 = vst [vmem:[%s260 + $0x2c] sm:$0xf] %v1673
        %1802 = vst [vmem:[%s260 + $0x30] sm:$0xf] %v1674
        %1803 = vst [vmem:[%s260 + $0x34] sm:$0xf] %v1675
        %1804 = vst [vmem:[%s260 + $0x38] sm:$0xf] %v1676
        %1805 = vst [vmem:[%s260 + $0x3c] sm:$0xf] %v1677
        %1806 = vst [vmem:[%s260 + $0x40] sm:$0xf] %v1678
        %1807 = vst [vmem:[%s260 + $0x44] sm:$0xf] %v1679
        %1808 = vst [vmem:[%s260 + $0x48] sm:$0xf] %v1680
        %1809 = vst [vmem:[%s260 + $0x4c] sm:$0xf] %v1681
        %1810 = vst [vmem:[%s260 + $0x50] sm:$0xf] %v1682
        %1811 = vst [vmem:[%s260 + $0x54] sm:$0xf] %v1683
        %1812 = vst [vmem:[%s260 + $0x58] sm:$0xf] %v1684
        %1813 = vst [vmem:[%s260 + $0x5c] sm:$0xf] %v1685
        %1814 = vst [vmem:[%s260 + $0x60] sm:$0xf] %v1686
        %1815 = vst [vmem:[%s260 + $0x64] sm:$0xf] %v1687
        %1816 = vst [vmem:[%s260 + $0x68] sm:$0xf] %v1688
        %1817 = vst [vmem:[%s260 + $0x6c] sm:$0xf] %v1689
        %1818 = vst [vmem:[%s260 + $0x70] sm:$0xf] %v1690
        %1819 = vst [vmem:[%s260 + $0x74] sm:$0xf] %v1691
        %1820 = vst [vmem:[%s260 + $0x78] sm:$0xf] %v1692
        %1821 = vst [vmem:[%s260 + $0x7c] sm:$0xf] %v1693
        %1822 = vst [vmem:[%s260 + $0x80] sm:$0xf] %v1694
        %1823 = vst [vmem:[%s260 + $0x84] sm:$0xf] %v1695
        %1824 = vst [vmem:[%s260 + $0x88] sm:$0xf] %v1696
        %1825 = vst [vmem:[%s260 + $0x8c] sm:$0xf] %v1697
        %1826 = vst [vmem:[%s260 + $0x90] sm:$0xf] %v1698
        %1827 = vst [vmem:[%s260 + $0x94] sm:$0xf] %v1699
        %1828 = vst [vmem:[%s260 + $0x98] sm:$0xf] %v1700
        %1829 = vst [vmem:[%s260 + $0x9c] sm:$0xf] %v1701
        %1830 = vst [vmem:[%s260 + $0xa0] sm:$0xf] %v1702
        %1831 = vst [vmem:[%s260 + $0xa4] sm:$0xf] %v1703
        %1832 = vst [vmem:[%s260 + $0xa8] sm:$0xf] %v1704
        %1833 = vst [vmem:[%s260 + $0xac] sm:$0xf] %v1705
        %1834 = vst [vmem:[%s260 + $0xb0] sm:$0xf] %v1706
        %1835 = vst [vmem:[%s260 + $0xb4] sm:$0xf] %v1707
        %1836 = vst [vmem:[%s260 + $0xb8] sm:$0xf] %v1708
        %1837 = vst [vmem:[%s260 + $0xbc] sm:$0xf] %v1709
        %1838 = vst [vmem:[%s260 + $0xc0] sm:$0xf] %v1710
        %1839 = vst [vmem:[%s260 + $0xc4] sm:$0xf] %v1711
        %1840 = vst [vmem:[%s260 + $0xc8] sm:$0xf] %v1712
        %1841 = vst [vmem:[%s260 + $0xcc] sm:$0xf] %v1713
        %1842 = vst [vmem:[%s260 + $0xd0] sm:$0xf] %v1714
        %1843 = vst [vmem:[%s260 + $0xd4] sm:$0xf] %v1715
        %1844 = vst [vmem:[%s260 + $0xd8] sm:$0xf] %v1716
        %1845 = vst [vmem:[%s260 + $0xdc] sm:$0xf] %v1717
        %1846 = vst [vmem:[%s260 + $0xe0] sm:$0xf] %v1718
        %1847 = vst [vmem:[%s260 + $0xe4] sm:$0xf] %v1719
        %1848 = vst [vmem:[%s260 + $0xe8] sm:$0xf] %v1720
        %1849 = vst [vmem:[%s260 + $0xec] sm:$0xf] %v1721
        %1850 = vst [vmem:[%s260 + $0xf0] sm:$0xf] %v1722
        %1851 = vst [vmem:[%s260 + $0xf4] sm:$0xf] %v1723
        %1852 = vst [vmem:[%s260 + $0xf8] sm:$0xf] %v1724
        %1853 = vst [vmem:[%s260 + $0xfc] sm:$0xf] %v1725
      $region40: #{_input_fwd.1} parent=31 // pred_fallthru
        _
      %s1854 = smul.u32 64, %s19
      %p1855 = scmp.lt.s32.totalorder %s1854, 1599
      %s1856 = scalar_select %p1855, %s1854, 1599
      %p1857 = scmp.lt.s32.totalorder %s20, 0
      %s1858 = scalar_select %p1857, %s20, 0
      %s1859 = sadd.s32 %s1858, %s1856
      %s1860 = smul.addr %s1859, 4
      %s1861 = scalar_lea.vmem %s3, %s1860
      // Predicated region
      $region41: #{_input_fwd.1} parent=31 // pred_check
        %p1862 = pneg %p135
      $region42: #{_input_fwd.1} parent=31 // pred_check_branch
        %1864 = sbr.rel (%p1862) target = $region44
      $region43: #{_input_fwd.1} parent=31 // pred_region
        %s1865 = smul.u32 64, %s19
      $region44: #{_input_fwd.1} parent=31 // pred_fallthru
        _
    $region32: #{_input_fwd.1} parent=5 // pred_fallthru
      _
    %p1866 = scmp.le.s32.totalorder 2, %s9
    // Predicated region
    $region45: #{_input_fwd.1} parent=5 // pred_check
      %p1867 = pneg %p1866
    $region46: #{_input_fwd.1} parent=5 // pred_check_branch
      %1869 = sbr.rel (%p1867) target = $region48
    $region47: #{_input_fwd.1} parent=5 // pred_region
      %s1870 = ssub.s32 %s9, 2
      // Predicated region
      $region49: #{_input_fwd.1} parent=47 // pred_check
        %p1871 = pneg %p141
      $region50: #{_input_fwd.1} parent=47 // pred_check_branch
        %1873 = sbr.rel (%p1871) target = $region52
      $region51: #{_input_fwd.1} parent=47 // pred_region
        %s1874 = smul.u32 64, %s22
        %p1875 = scmp.lt.s32.totalorder %s1874, 1599
        %s1876 = scalar_select %p1875, %s1874, 1599
        %p1877 = scmp.lt.s32.totalorder %s23, 0
        %s1878 = scalar_select %p1877, %s23, 0
        %s1879 = sadd.s32 %s1878, %s1876
        %s1880 = smul.addr %s1879, 4
        %s1881 = scalar_lea.vmem %s3, %s1880
      $region52: #{_input_fwd.1} parent=47 // pred_fallthru
        _
    $region48: #{_input_fwd.1} parent=5 // pred_fallthru
      _
  $region6: #{_input_fwd.1} parent=0 // loop_footer
    %s13 = sadd.s32 1, %s9
  $region7: #{_input_fwd.1} parent=0 // loop_footer_branch
    %8 = sbr.rel target = $region3
  $region8: #{_input_fwd.1} parent=0 // loop_exit
    _

</llo_original>
